<compile_context>
chip_gen: v7x
topology: tpu7x:2x2x1
jax: 0.10.0
libtpu: 0.0.40
codegen_flags: <defaults>
</compile_context>

<pallas_src>
import functools

import jax
import jax.numpy as jnp
from jax.experimental import pallas as pl
from jax.experimental.pallas import tpu as pltpu


def _round_up(x, m):
    return ((x + m - 1) // m) * m


# ----------------------------------------------------------------------------
# Kernel A: attention (per (batch, head)) + residual + LN1 + gate softmax.
# ----------------------------------------------------------------------------
def _attn_ln1_gate_kernel(src_ref, wqkv_ref, bqkv_ref, wo_ref, bo_ref,
                          g1_ref, be1_ref, wg_ref, bg_ref,
                          x1_ref, sc_ref, acc_ref, *, head_dim, scale, eps):
    h = pl.program_id(1)

    x = src_ref[0]                                    # (T, D) f32
    xb = x.astype(jnp.bfloat16)

    @pl.when(h == 0)
    def _():
        # residual base + output-projection bias (added exactly once).
        acc_ref[...] = x + bo_ref[...]

    # Fused per-head Q/K/V projection: one (T, D) @ (D, 3*hd) bf16 matmul.
    qkv = jnp.dot(xb, wqkv_ref[0],
                  preferred_element_type=jnp.float32) + bqkv_ref[0]
    # Fold the softmax scale into q (T*hd multiplies instead of T*T).
    q = (qkv[:, :head_dim] * scale).astype(jnp.bfloat16)
    k = qkv[:, head_dim:2 * head_dim].astype(jnp.bfloat16)
    v = qkv[:, 2 * head_dim:].astype(jnp.bfloat16)

    # scores = (q*scale) @ k^T (contract head_dim), f32 accumulation on MXU.
    s = jax.lax.dot_general(q, k, (((1,), (1,)), ((), ())),
                            preferred_element_type=jnp.float32)
    m = jnp.max(s, axis=-1, keepdims=True)
    p = jnp.exp(s - m)
    p = p * pl.reciprocal(jnp.sum(p, axis=-1, keepdims=True), approx=True)

    ctx = jnp.dot(p.astype(jnp.bfloat16), v,
                  preferred_element_type=jnp.float32)          # (T, hd)
    # Per-head slice of the output projection -> accumulate (no lane concat).
    acc_ref[...] += jnp.dot(ctx.astype(jnp.bfloat16), wo_ref[0],
                            preferred_element_type=jnp.float32)

    @pl.when(h == pl.num_programs(1) - 1)
    def _():
        sres = acc_ref[...]                                     # x + attn_out
        mu = jnp.mean(sres, axis=-1, keepdims=True)
        var = jnp.mean((sres - mu) ** 2, axis=-1, keepdims=True)
        x1 = (sres - mu) * jax.lax.rsqrt(var + eps) * g1_ref[...] + be1_ref[...]
        x1_ref[0] = x1
        # Gating network fused here (avoids an extra HBM round trip).  Exact
        # normalization: the scores feed routing and the aux loss.
        gl = jnp.dot(x1.astype(jnp.bfloat16), wg_ref[...],
                     preferred_element_type=jnp.float32) + bg_ref[...]
        gm = jnp.max(gl, axis=-1, keepdims=True)
        ge = jnp.exp(gl - gm)
        sc_ref[0] = ge / jnp.sum(ge, axis=-1, keepdims=True)


def attn_ln1_gate(src, p, *, nhead, eps):
    B, T, D = src.shape
    E = p['wg'].shape[-1]
    hd = D // nhead

    # Per-head weight packing (done once in the wrapper, streamed per head).
    def per_head(w):                                   # (D, D) -> (H, D, hd)
        return jnp.transpose(w.reshape(D, nhead, hd), (1, 0, 2))

    wqkv = jnp.concatenate([per_head(p['wq']), per_head(p['wk']),
                            per_head(p['wv'])], axis=-1).astype(jnp.bfloat16)
    bqkv = jnp.concatenate([p['bq'].reshape(nhead, hd),
                            p['bk'].reshape(nhead, hd),
                            p['bv'].reshape(nhead, hd)], axis=-1)[:, None, :]
    wo = p['wo'].reshape(nhead, hd, D).astype(jnp.bfloat16)     # (H, hd, D)

    kernel = functools.partial(_attn_ln1_gate_kernel, head_dim=hd,
                               scale=hd ** -0.5, eps=eps)
    x1, scores = pl.pallas_call(
        kernel,
        out_shape=(jax.ShapeDtypeStruct((B, T, D), jnp.float32),
                   jax.ShapeDtypeStruct((B, T, E), jnp.float32)),
        grid=(B, nhead),
        in_specs=[pl.BlockSpec((1, T, D), lambda b, h: (b, 0, 0)),
                  pl.BlockSpec((1, D, 3 * hd), lambda b, h: (h, 0, 0)),
                  pl.BlockSpec((1, 1, 3 * hd), lambda b, h: (h, 0, 0)),
                  pl.BlockSpec((1, hd, D), lambda b, h: (h, 0, 0)),
                  pl.BlockSpec((1, D), lambda b, h: (0, 0)),
                  pl.BlockSpec((1, D), lambda b, h: (0, 0)),
                  pl.BlockSpec((1, D), lambda b, h: (0, 0)),
                  pl.BlockSpec((D, E), lambda b, h: (0, 0)),
                  pl.BlockSpec((1, E), lambda b, h: (0, 0))],
        out_specs=(pl.BlockSpec((1, T, D), lambda b, h: (b, 0, 0)),
                   pl.BlockSpec((1, T, E), lambda b, h: (b, 0, 0))),
        scratch_shapes=[pltpu.VMEM((T, D), jnp.float32)],
        compiler_params=pltpu.CompilerParams(
            dimension_semantics=("parallel", "arbitrary"),
            vmem_limit_bytes=48 * 1024 * 1024),
    )(src, wqkv, bqkv, wo, p['bo'], p['ln1_g'], p['ln1_b'],
      p['wg'].astype(jnp.bfloat16), p['bg'])
    # TODO(synk): flash-style kv-tiling (online softmax) for very long T is
    # not implemented; the (T, T) per-head score block is materialized.
    return x1, scores


# ----------------------------------------------------------------------------
# Kernel B: MoE experts (token-tiled, expert-resident accumulator) + LN2.
# ----------------------------------------------------------------------------
def _moe_ln2_kernel(mask_ref, x_ref, wt_ref, w1_ref, b1_ref, w2_ref, b2_ref,
                    g2_ref, be2_ref, out_ref, acc_ref, *, eps):
    t = pl.program_id(0)
    e = pl.program_id(1)

    x = x_ref[...]                                # (tm, D) f32, VMEM load

    @pl.when(e == 0)
    def _():
        acc_ref[...] = x                          # residual base

    @pl.when(mask_ref[t, e] > 0)                  # skip inactive experts
    def _():
        xb = x.astype(jnp.bfloat16)
        hdd = jnp.dot(xb, w1_ref[0], preferred_element_type=jnp.float32) + b1_ref[0]
        hdd = jnp.maximum(hdd, 0.0)               # ReLU
        y = jnp.dot(hdd.astype(jnp.bfloat16), w2_ref[0],
                    preferred_element_type=jnp.float32) + b2_ref[0]
        acc_ref[...] += wt_ref[0] * y             # gate-weighted accumulate

    @pl.when(e == pl.num_programs(1) - 1)
    def _():
        s = acc_ref[...]
        mu = jnp.mean(s, axis=-1, keepdims=True)
        var = jnp.mean((s - mu) ** 2, axis=-1, keepdims=True)
        out_ref[...] = (s - mu) * jax.lax.rsqrt(var + eps) * g2_ref[...] + be2_ref[...]


def moe_ln2(x1, w_dense, p, *, eps):
    B, T, D = x1.shape
    E, _, F = p['w1'].shape
    N = B * T
    tm = min(512, _round_up(N, 8))
    Np = _round_up(N, tm)
    nt = Np // tm

    x_flat = x1.reshape(N, D)
    w_flat = w_dense.reshape(N, E)
    if Np != N:
        x_flat = jnp.pad(x_flat, ((0, Np - N), (0, 0)))
        w_flat = jnp.pad(w_flat, ((0, Np - N), (0, 0)))
    wt = jnp.transpose(w_flat, (1, 0))[..., None]                 # (E, Np, 1)
    mask = (w_flat.reshape(nt, tm, E) > 0).any(axis=1).astype(jnp.int32)

    kernel = functools.partial(_moe_ln2_kernel, eps=eps)
    grid_spec = pltpu.PrefetchScalarGridSpec(
        num_scalar_prefetch=1,
        grid=(nt, E),
        in_specs=[pl.BlockSpec((tm, D), lambda t, e, m: (t, 0)),
                  pl.BlockSpec((1, tm, 1), lambda t, e, m: (e, t, 0)),
                  pl.BlockSpec((1, D, F), lambda t, e, m: (e, 0, 0)),
                  pl.BlockSpec((1, 1, F), lambda t, e, m: (e, 0, 0)),
                  pl.BlockSpec((1, F, D), lambda t, e, m: (e, 0, 0)),
                  pl.BlockSpec((1, 1, D), lambda t, e, m: (e, 0, 0)),
                  pl.BlockSpec((1, D), lambda t, e, m: (0, 0)),
                  pl.BlockSpec((1, D), lambda t, e, m: (0, 0))],
        out_specs=pl.BlockSpec((tm, D), lambda t, e, m: (t, 0)),
        scratch_shapes=[pltpu.VMEM((tm, D), jnp.float32)],
    )
    out_flat = pl.pallas_call(
        kernel,
        out_shape=jax.ShapeDtypeStruct((Np, D), jnp.float32),
        grid_spec=grid_spec,
        compiler_params=pltpu.CompilerParams(
            dimension_semantics=("parallel", "arbitrary"),
            vmem_limit_bytes=48 * 1024 * 1024),
    )(mask, x_flat, wt,
      p['w1'].astype(jnp.bfloat16), p['b1'],
      p['w2'].astype(jnp.bfloat16), p['b2'],
      p['ln2_g'], p['ln2_b'])
    # TODO(synk): inactive-expert weight DMA is still issued (only MXU work is
    # skipped); a fully routed (sorted-token) MoE would also skip the DMA.
    return out_flat[:N].reshape(B, T, D)


# ----------------------------------------------------------------------------
# Full encoder layer forward (glue in plain JAX).
# ----------------------------------------------------------------------------
def transformer_moe_layer(src, p, *, nhead, eps=1e-5):
    E = p['wg'].shape[-1]

    # attention + residual + norm1 + gate softmax (one fused kernel)
    x1, scores = attn_ln1_gate(src, p, nhead=nhead, eps=eps)

    # top-2 routing -> dense per-token expert weights (0 for non-selected)
    top2_s, top2_i = jax.lax.top_k(scores, 2)
    w_dense = (jax.nn.one_hot(top2_i[..., 0], E, dtype=scores.dtype) * top2_s[..., 0:1]
               + jax.nn.one_hot(top2_i[..., 1], E, dtype=scores.dtype) * top2_s[..., 1:2])

    # MoE experts + residual + norm2 (one fused kernel)
    out = moe_ln2(x1, w_dense, p, eps=eps)

    # load-balancing auxiliary loss (tiny reduction, plain JAX glue)
    importance = jnp.sum(scores, axis=(0, 1))
    load_loss = E * jnp.sum(importance ** 2) / (jnp.sum(importance) ** 2 + 1e-10)
    return out, load_loss


# ----------------------------------------------------------------------------
# Deterministic parameter init.
# ----------------------------------------------------------------------------
def init_params(key, D, F, E):
    ks = jax.random.split(key, 16)
    s = 0.05
    n = lambda k, shape: s * jax.random.normal(k, shape, jnp.float32)
    return {
        'wq': n(ks[0], (D, D)), 'bq': n(ks[1], (1, D)),
        'wk': n(ks[2], (D, D)), 'bk': n(ks[3], (1, D)),
        'wv': n(ks[4], (D, D)), 'bv': n(ks[5], (1, D)),
        'wo': n(ks[6], (D, D)), 'bo': n(ks[7], (1, D)),
        'ln1_g': jnp.ones((1, D), jnp.float32),
        'ln1_b': jnp.zeros((1, D), jnp.float32),
        'ln2_g': jnp.ones((1, D), jnp.float32),
        'ln2_b': jnp.zeros((1, D), jnp.float32),
        'wg': n(ks[8], (D, E)), 'bg': n(ks[9], (1, E)),
        'w1': n(ks[10], (E, D, F)), 'b1': n(ks[11], (E, 1, F)),
        'w2': n(ks[12], (E, F, D)), 'b2': n(ks[13], (E, 1, D)),
    }


if __name__ == "__main__":
    B, T, D, H, F, E = 2, 8, 32, 4, 64, 4
    key = jax.random.PRNGKey(0)
    k_src, k_par = jax.random.split(key)
    src = jax.random.normal(k_src, (B, T, D), jnp.float32)
    params = init_params(k_par, D, F, E)

    fwd = jax.jit(functools.partial(transformer_moe_layer, nhead=H))
    out, aux_loss = fwd(src, params)
    jax.block_until_ready((out, aux_loss))
    assert out.shape == (B, T, D)
    assert aux_loss.shape == ()
    assert bool(jnp.all(jnp.isfinite(out)))
    assert bool(jnp.isfinite(aux_loss))
    # TODO(synk): dropout / gating noise are training-only; eval path is exact.
    # TODO(synk): src_mask / key_padding_mask (None in this layer) not supported.
    print("KERNEL_OK")
</pallas_src>

<mosaic_0001>
module attributes {stable_mosaic.version = 11 : i64} {
  func.func @_attn_ln1_gate_kernel(%arg0: i32, %arg1: i32, %arg2: memref<1x8x32xf32, #tpu.memory_space<vmem>>, %arg3: memref<1x32x24xbf16, #tpu.memory_space<vmem>>, %arg4: memref<1x1x24xf32, #tpu.memory_space<vmem>>, %arg5: memref<1x8x32xbf16, #tpu.memory_space<vmem>>, %arg6: memref<1x32xf32, #tpu.memory_space<vmem>>, %arg7: memref<1x32xf32, #tpu.memory_space<vmem>>, %arg8: memref<1x32xf32, #tpu.memory_space<vmem>>, %arg9: memref<32x4xbf16, #tpu.memory_space<vmem>>, %arg10: memref<1x4xf32, #tpu.memory_space<vmem>>, %arg11: memref<1x8x32xf32, #tpu.memory_space<vmem>>, %arg12: memref<1x8x4xf32, #tpu.memory_space<vmem>>, %arg13: memref<8x32xf32, #tpu.memory_space<vmem>>) attributes {dimension_semantics = [#tpu.dimension_semantics<parallel>, #tpu.dimension_semantics<arbitrary>], iteration_bounds = array<i64: 2, 4>, scalar_prefetch = 0 : i64, scratch_operands = 1 : i64, tpu.core_type = #tpu.core_type<tc>, window_params = [{transform_indices = @transform_0, window_bounds = array<i64: 1, 8, 32>}, {transform_indices = @transform_1, window_bounds = array<i64: 1, 32, 24>}, {transform_indices = @transform_2, window_bounds = array<i64: 1, 1, 24>}, {transform_indices = @transform_3, window_bounds = array<i64: 1, 8, 32>}, {pipeline_mode = #tpu.pipeline_mode<synchronous>, transform_indices = @transform_4, window_bounds = array<i64: 1, 32>}, {pipeline_mode = #tpu.pipeline_mode<synchronous>, transform_indices = @transform_5, window_bounds = array<i64: 1, 32>}, {pipeline_mode = #tpu.pipeline_mode<synchronous>, transform_indices = @transform_6, window_bounds = array<i64: 1, 32>}, {pipeline_mode = #tpu.pipeline_mode<synchronous>, transform_indices = @transform_7, window_bounds = array<i64: 32, 4>}, {pipeline_mode = #tpu.pipeline_mode<synchronous>, transform_indices = @transform_8, window_bounds = array<i64: 1, 4>}, {transform_indices = @transform_9, window_bounds = array<i64: 1, 8, 32>}, {transform_indices = @transform_10, window_bounds = array<i64: 1, 8, 4>}]} {
    %c0 = arith.constant 0 : index
    %c0_0 = arith.constant 0 : index
    %c0_1 = arith.constant 0 : index
    %0 = vector.load %arg2[%c0, %c0_0, %c0_1] : memref<1x8x32xf32, #tpu.memory_space<vmem>>, vector<1x8x32xf32>
    %1 = vector.shape_cast %0 : vector<1x8x32xf32> to vector<8x32xf32>
    %2 = arith.truncf %1 : vector<8x32xf32> to vector<8x32xbf16>
    %c0_i32 = arith.constant 0 : i32
    %3 = arith.cmpi eq, %arg1, %c0_i32 : i32
    %4 = arith.extui %3 : i1 to i32
    %c0_i32_2 = arith.constant 0 : i32
    %5 = arith.cmpi ne, %4, %c0_i32_2 : i32
    scf.if %5 {
      %c0_23 = arith.constant 0 : index
      %c0_24 = arith.constant 0 : index
      %44 = vector.load %arg6[%c0_23, %c0_24] : memref<1x32xf32, #tpu.memory_space<vmem>>, vector<1x32xf32>
      %45 = vector.broadcast %44 : vector<1x32xf32> to vector<8x32xf32>
      %46 = arith.addf %1, %45 : vector<8x32xf32>
      %c0_25 = arith.constant 0 : index
      %c0_26 = arith.constant 0 : index
      %47 = vector.load %arg13[%c0_25, %c0_26] : memref<8x32xf32, #tpu.memory_space<vmem>>, vector<8x32xf32>
      tpu.vector_store %arg13[%c0_25, %c0_26], %46 {strides = array<i32>} : memref<8x32xf32, #tpu.memory_space<vmem>>, vector<8x32xf32>,
    } else {
    }
    %c0_3 = arith.constant 0 : index
    %c0_4 = arith.constant 0 : index
    %c0_5 = arith.constant 0 : index
    %6 = vector.load %arg3[%c0_3, %c0_4, %c0_5] : memref<1x32x24xbf16, #tpu.memory_space<vmem>>, vector<1x32x24xbf16>
    %7 = vector.shape_cast %6 : vector<1x32x24xbf16> to vector<32x24xbf16>
    %cst = arith.constant dense<0.000000e+00> : vector<8x24xf32>
    %8 = tpu.matmul %2, %7, %cst {dimension_numbers = #tpu.dot_dimension_numbers<[1], [0], [0], [1], [0, 0, 1, 1], [], []>} : vector<8x32xbf16>, vector<32x24xbf16>, vector<8x24xf32> -> vector<8x24xf32>
    %c0_6 = arith.constant 0 : index
    %c0_7 = arith.constant 0 : index
    %c0_8 = arith.constant 0 : index
    %9 = vector.load %arg4[%c0_6, %c0_7, %c0_8] : memref<1x1x24xf32, #tpu.memory_space<vmem>>, vector<1x1x24xf32>
    %10 = vector.shape_cast %9 : vector<1x1x24xf32> to vector<1x24xf32>
    %11 = vector.broadcast %10 : vector<1x24xf32> to vector<8x24xf32>
    %12 = arith.addf %8, %11 : vector<8x24xf32>
    %13 = vector.extract_strided_slice %12 {offsets = [0, 0], sizes = [8, 8], strides = [1, 1]} : vector<8x24xf32> to vector<8x8xf32>
    %cst_9 = arith.constant 0.353553385 : f32
    %14 = vector.broadcast %cst_9 : f32 to vector<8x8xf32>
    %15 = arith.mulf %13, %14 : vector<8x8xf32>
    %16 = arith.truncf %15 : vector<8x8xf32> to vector<8x8xbf16>
    %17 = vector.extract_strided_slice %12 {offsets = [0, 8], sizes = [8, 8], strides = [1, 1]} : vector<8x24xf32> to vector<8x8xf32>
    %18 = arith.truncf %17 : vector<8x8xf32> to vector<8x8xbf16>
    %19 = vector.extract_strided_slice %12 {offsets = [0, 16], sizes = [8, 8], strides = [1, 1]} : vector<8x24xf32> to vector<8x8xf32>
    %20 = arith.truncf %19 : vector<8x8xf32> to vector<8x8xbf16>
    %cst_10 = arith.constant dense<0.000000e+00> : vector<8x8xf32>
    %21 = tpu.matmul %16, %18, %cst_10 {dimension_numbers = #tpu.dot_dimension_numbers<[1], [1], [0], [0], [0, 0, 1, 0], [], []>} : vector<8x8xbf16>, vector<8x8xbf16>, vector<8x8xf32> -> vector<8x8xf32>
    %cst_11 = arith.constant dense<0xFF800000> : vector<8xf32>
    %22 = vector.multi_reduction <maximumf>, %21, %cst_11 [1] : vector<8x8xf32> to vector<8xf32>
    %23 = vector.shape_cast %22 : vector<8xf32> to vector<8x1xf32>
    %24 = vector.broadcast %23 : vector<8x1xf32> to vector<8x8xf32>
    %25 = arith.subf %21, %24 : vector<8x8xf32>
    %26 = math.exp %25 : vector<8x8xf32>
    %cst_12 = arith.constant dense<0.000000e+00> : vector<8xf32>
    %27 = vector.multi_reduction <add>, %26, %cst_12 [1] : vector<8x8xf32> to vector<8xf32>
    %28 = vector.shape_cast %27 : vector<8xf32> to vector<8x1xf32>
    %29 = tpu.reciprocal %28 {approx = true} : vector<8x1xf32> -> vector<8x1xf32>
    %30 = vector.broadcast %29 : vector<8x1xf32> to vector<8x8xf32>
    %31 = arith.mulf %26, %30 : vector<8x8xf32>
    %32 = arith.truncf %31 : vector<8x8xf32> to vector<8x8xbf16>
    %cst_13 = arith.constant dense<0.000000e+00> : vector<8x8xf32>
    %33 = tpu.matmul %32, %20, %cst_13 {dimension_numbers = #tpu.dot_dimension_numbers<[1], [0], [0], [1], [0, 0, 1, 1], [], []>} : vector<8x8xbf16>, vector<8x8xbf16>, vector<8x8xf32> -> vector<8x8xf32>
    %c0_14 = arith.constant 0 : index
    %c0_15 = arith.constant 0 : index
    %34 = vector.load %arg13[%c0_14, %c0_15] : memref<8x32xf32, #tpu.memory_space<vmem>>, vector<8x32xf32>
    %35 = arith.truncf %33 : vector<8x8xf32> to vector<8x8xbf16>
    %c0_16 = arith.constant 0 : index
    %c0_17 = arith.constant 0 : index
    %c0_18 = arith.constant 0 : index
    %36 = vector.load %arg5[%c0_16, %c0_17, %c0_18] : memref<1x8x32xbf16, #tpu.memory_space<vmem>>, vector<1x8x32xbf16>
    %37 = vector.shape_cast %36 : vector<1x8x32xbf16> to vector<8x32xbf16>
    %cst_19 = arith.constant dense<0.000000e+00> : vector<8x32xf32>
    %38 = tpu.matmul %35, %37, %cst_19 {dimension_numbers = #tpu.dot_dimension_numbers<[1], [0], [0], [1], [0, 0, 1, 1], [], []>} : vector<8x8xbf16>, vector<8x32xbf16>, vector<8x32xf32> -> vector<8x32xf32>
    %39 = arith.addf %34, %38 : vector<8x32xf32>
    %c0_20 = arith.constant 0 : index
    %c0_21 = arith.constant 0 : index
    %40 = vector.load %arg13[%c0_20, %c0_21] : memref<8x32xf32, #tpu.memory_space<vmem>>, vector<8x32xf32>
    tpu.vector_store %arg13[%c0_20, %c0_21], %39 {strides = array<i32>} : memref<8x32xf32, #tpu.memory_space<vmem>>, vector<8x32xf32>,
    %c3_i32 = arith.constant 3 : i32
    %41 = arith.cmpi eq, %arg1, %c3_i32 : i32
    %42 = arith.extui %41 : i1 to i32
    %c0_i32_22 = arith.constant 0 : i32
    %43 = arith.cmpi ne, %42, %c0_i32_22 : i32
    scf.if %43 {
      %c0_23 = arith.constant 0 : index
      %c0_24 = arith.constant 0 : index
      %44 = vector.load %arg13[%c0_23, %c0_24] : memref<8x32xf32, #tpu.memory_space<vmem>>, vector<8x32xf32>
      %cst_25 = arith.constant dense<0.000000e+00> : vector<8xf32>
      %45 = vector.multi_reduction <add>, %44, %cst_25 [1] : vector<8x32xf32> to vector<8xf32>
      %46 = vector.shape_cast %45 : vector<8xf32> to vector<8x1xf32>
      %cst_26 = arith.constant 3.200000e+01 : f32
      %47 = vector.broadcast %cst_26 : f32 to vector<8x1xf32>
      %48 = arith.divf %46, %47 : vector<8x1xf32>
      %49 = vector.broadcast %48 : vector<8x1xf32> to vector<8x32xf32>
      %50 = arith.subf %44, %49 : vector<8x32xf32>
      %51 = arith.mulf %50, %50 : vector<8x32xf32>
      %cst_27 = arith.constant dense<0.000000e+00> : vector<8xf32>
      %52 = vector.multi_reduction <add>, %51, %cst_27 [1] : vector<8x32xf32> to vector<8xf32>
      %53 = vector.shape_cast %52 : vector<8xf32> to vector<8x1xf32>
      %cst_28 = arith.constant 3.200000e+01 : f32
      %54 = vector.broadcast %cst_28 : f32 to vector<8x1xf32>
      %55 = arith.divf %53, %54 : vector<8x1xf32>
      %56 = vector.broadcast %48 : vector<8x1xf32> to vector<8x32xf32>
      %57 = arith.subf %44, %56 : vector<8x32xf32>
      %cst_29 = arith.constant 9.99999974E-6 : f32
      %58 = vector.broadcast %cst_29 : f32 to vector<8x1xf32>
      %59 = arith.addf %55, %58 : vector<8x1xf32>
      %60 = math.rsqrt %59 : vector<8x1xf32>
      %61 = vector.broadcast %60 : vector<8x1xf32> to vector<8x32xf32>
      %62 = arith.mulf %57, %61 : vector<8x32xf32>
      %c0_30 = arith.constant 0 : index
      %c0_31 = arith.constant 0 : index
      %63 = vector.load %arg7[%c0_30, %c0_31] : memref<1x32xf32, #tpu.memory_space<vmem>>, vector<1x32xf32>
      %64 = vector.broadcast %63 : vector<1x32xf32> to vector<8x32xf32>
      %65 = arith.mulf %62, %64 : vector<8x32xf32>
      %c0_32 = arith.constant 0 : index
      %c0_33 = arith.constant 0 : index
      %66 = vector.load %arg8[%c0_32, %c0_33] : memref<1x32xf32, #tpu.memory_space<vmem>>, vector<1x32xf32>
      %67 = vector.broadcast %66 : vector<1x32xf32> to vector<8x32xf32>
      %68 = arith.addf %65, %67 : vector<8x32xf32>
      %c0_34 = arith.constant 0 : index
      %c0_35 = arith.constant 0 : index
      %c0_36 = arith.constant 0 : index
      %69 = vector.load %arg11[%c0_34, %c0_35, %c0_36] : memref<1x8x32xf32, #tpu.memory_space<vmem>>, vector<1x8x32xf32>
      %70 = vector.shape_cast %69 : vector<1x8x32xf32> to vector<8x32xf32>
      %71 = vector.shape_cast %68 : vector<8x32xf32> to vector<1x8x32xf32>
      tpu.vector_store %arg11[%c0_34, %c0_35, %c0_36], %71 {strides = array<i32>} : memref<1x8x32xf32, #tpu.memory_space<vmem>>, vector<1x8x32xf32>,
      %72 = arith.truncf %68 : vector<8x32xf32> to vector<8x32xbf16>
      %c0_37 = arith.constant 0 : index
      %c0_38 = arith.constant 0 : index
      %73 = vector.load %arg9[%c0_37, %c0_38] : memref<32x4xbf16, #tpu.memory_space<vmem>>, vector<32x4xbf16>
      %cst_39 = arith.constant dense<0.000000e+00> : vector<8x4xf32>
      %74 = tpu.matmul %72, %73, %cst_39 {dimension_numbers = #tpu.dot_dimension_numbers<[1], [0], [0], [1], [0, 0, 1, 1], [], []>} : vector<8x32xbf16>, vector<32x4xbf16>, vector<8x4xf32> -> vector<8x4xf32>
      %c0_40 = arith.constant 0 : index
      %c0_41 = arith.constant 0 : index
      %75 = vector.load %arg10[%c0_40, %c0_41] : memref<1x4xf32, #tpu.memory_space<vmem>>, vector<1x4xf32>
      %76 = vector.broadcast %75 : vector<1x4xf32> to vector<8x4xf32>
      %77 = arith.addf %74, %76 : vector<8x4xf32>
      %cst_42 = arith.constant dense<0xFF800000> : vector<8xf32>
      %78 = vector.multi_reduction <maximumf>, %77, %cst_42 [1] : vector<8x4xf32> to vector<8xf32>
      %79 = vector.shape_cast %78 : vector<8xf32> to vector<8x1xf32>
      %80 = vector.broadcast %79 : vector<8x1xf32> to vector<8x4xf32>
      %81 = arith.subf %77, %80 : vector<8x4xf32>
      %82 = math.exp %81 : vector<8x4xf32>
      %cst_43 = arith.constant dense<0.000000e+00> : vector<8xf32>
      %83 = vector.multi_reduction <add>, %82, %cst_43 [1] : vector<8x4xf32> to vector<8xf32>
      %84 = vector.shape_cast %83 : vector<8xf32> to vector<8x1xf32>
      %85 = vector.broadcast %84 : vector<8x1xf32> to vector<8x4xf32>
      %86 = arith.divf %82, %85 : vector<8x4xf32>
      %c0_44 = arith.constant 0 : index
      %c0_45 = arith.constant 0 : index
      %c0_46 = arith.constant 0 : index
      %87 = vector.load %arg12[%c0_44, %c0_45, %c0_46] : memref<1x8x4xf32, #tpu.memory_space<vmem>>, vector<1x8x4xf32>
      %88 = vector.shape_cast %87 : vector<1x8x4xf32> to vector<8x4xf32>
      %89 = vector.shape_cast %86 : vector<8x4xf32> to vector<1x8x4xf32>
      tpu.vector_store %arg12[%c0_44, %c0_45, %c0_46], %89 {strides = array<i32>} : memref<1x8x4xf32, #tpu.memory_space<vmem>>, vector<1x8x4xf32>,
    } else {
    }
    return
  }
  func.func @transform_0(%arg0: i32, %arg1: i32) -> (i32, i32, i32) {
    %c0_i32 = arith.constant 0 : i32
    %c0_i32_0 = arith.constant 0 : i32
    %c0_i32_1 = arith.constant 0 : i32
    return %arg0, %c0_i32, %c0_i32_0 : i32, i32, i32
  }
  func.func @transform_1(%arg0: i32, %arg1: i32) -> (i32, i32, i32) {
    %c0_i32 = arith.constant 0 : i32
    %c0_i32_0 = arith.constant 0 : i32
    %c0_i32_1 = arith.constant 0 : i32
    return %arg1, %c0_i32, %c0_i32_0 : i32, i32, i32
  }
  func.func @transform_2(%arg0: i32, %arg1: i32) -> (i32, i32, i32) {
    %c0_i32 = arith.constant 0 : i32
    %c0_i32_0 = arith.constant 0 : i32
    %c0_i32_1 = arith.constant 0 : i32
    return %arg1, %c0_i32, %c0_i32_0 : i32, i32, i32
  }
  func.func @transform_3(%arg0: i32, %arg1: i32) -> (i32, i32, i32) {
    %c0_i32 = arith.constant 0 : i32
    %c0_i32_0 = arith.constant 0 : i32
    %c0_i32_1 = arith.constant 0 : i32
    return %arg1, %c0_i32, %c0_i32_0 : i32, i32, i32
  }
  func.func @transform_4(%arg0: i32, %arg1: i32) -> (i32, i32) {
    %c0_i32 = arith.constant 0 : i32
    %c0_i32_0 = arith.constant 0 : i32
    %c0_i32_1 = arith.constant 0 : i32
    return %c0_i32, %c0_i32_0 : i32, i32
  }
  func.func @transform_5(%arg0: i32, %arg1: i32) -> (i32, i32) {
    %c0_i32 = arith.constant 0 : i32
    %c0_i32_0 = arith.constant 0 : i32
    %c0_i32_1 = arith.constant 0 : i32
    return %c0_i32, %c0_i32_0 : i32, i32
  }
  func.func @transform_6(%arg0: i32, %arg1: i32) -> (i32, i32) {
    %c0_i32 = arith.constant 0 : i32
    %c0_i32_0 = arith.constant 0 : i32
    %c0_i32_1 = arith.constant 0 : i32
    return %c0_i32, %c0_i32_0 : i32, i32
  }
  func.func @transform_7(%arg0: i32, %arg1: i32) -> (i32, i32) {
    %c0_i32 = arith.constant 0 : i32
    %c0_i32_0 = arith.constant 0 : i32
    %c0_i32_1 = arith.constant 0 : i32
    return %c0_i32, %c0_i32_0 : i32, i32
  }
  func.func @transform_8(%arg0: i32, %arg1: i32) -> (i32, i32) {
    %c0_i32 = arith.constant 0 : i32
    %c0_i32_0 = arith.constant 0 : i32
    %c0_i32_1 = arith.constant 0 : i32
    return %c0_i32, %c0_i32_0 : i32, i32
  }
  func.func @transform_9(%arg0: i32, %arg1: i32) -> (i32, i32, i32) {
    %c0_i32 = arith.constant 0 : i32
    %c0_i32_0 = arith.constant 0 : i32
    %c0_i32_1 = arith.constant 0 : i32
    return %arg0, %c0_i32, %c0_i32_0 : i32, i32, i32
  }
  func.func @transform_10(%arg0: i32, %arg1: i32) -> (i32, i32, i32) {
    %c0_i32 = arith.constant 0 : i32
    %c0_i32_0 = arith.constant 0 : i32
    %c0_i32_1 = arith.constant 0 : i32
    return %arg0, %c0_i32, %c0_i32_0 : i32, i32, i32
  }
}

module attributes {stable_mosaic.version = 11 : i64} {
  func.func @_moe_ln2_kernel(%arg0: i32, %arg1: i32, %arg2: memref<1x4xi32, #tpu.memory_space<smem>>, %arg3: memref<16x32xf32, #tpu.memory_space<vmem>>, %arg4: memref<1x16x1xf32, #tpu.memory_space<vmem>>, %arg5: memref<1x32x64xbf16, #tpu.memory_space<vmem>>, %arg6: memref<1x1x64xf32, #tpu.memory_space<vmem>>, %arg7: memref<1x64x32xbf16, #tpu.memory_space<vmem>>, %arg8: memref<1x1x32xf32, #tpu.memory_space<vmem>>, %arg9: memref<1x32xf32, #tpu.memory_space<vmem>>, %arg10: memref<1x32xf32, #tpu.memory_space<vmem>>, %arg11: memref<16x32xf32, #tpu.memory_space<vmem>>, %arg12: memref<16x32xf32, #tpu.memory_space<vmem>>) attributes {dimension_semantics = [#tpu.dimension_semantics<parallel>, #tpu.dimension_semantics<arbitrary>], iteration_bounds = array<i64: 1, 4>, scalar_prefetch = 1 : i64, scratch_operands = 1 : i64, tpu.core_type = #tpu.core_type<tc>, window_params = [{transform_indices = @transform_0, window_bounds = array<i64: 16, 32>}, {transform_indices = @transform_1, window_bounds = array<i64: 1, 16, 1>}, {transform_indices = @transform_2, window_bounds = array<i64: 1, 32, 64>}, {transform_indices = @transform_3, window_bounds = array<i64: 1, 1, 64>}, {transform_indices = @transform_4, window_bounds = array<i64: 1, 64, 32>}, {transform_indices = @transform_5, window_bounds = array<i64: 1, 1, 32>}, {pipeline_mode = #tpu.pipeline_mode<synchronous>, transform_indices = @transform_6, window_bounds = array<i64: 1, 32>}, {pipeline_mode = #tpu.pipeline_mode<synchronous>, transform_indices = @transform_7, window_bounds = array<i64: 1, 32>}, {transform_indices = @transform_8, window_bounds = array<i64: 16, 32>}]} {
    %c0 = arith.constant 0 : index
    %c0_0 = arith.constant 0 : index
    %0 = vector.load %arg3[%c0, %c0_0] : memref<16x32xf32, #tpu.memory_space<vmem>>, vector<16x32xf32>
    %c0_i32 = arith.constant 0 : i32
    %1 = arith.cmpi eq, %arg1, %c0_i32 : i32
    %2 = arith.extui %1 : i1 to i32
    %c0_i32_1 = arith.constant 0 : i32
    %3 = arith.cmpi ne, %2, %c0_i32_1 : i32
    scf.if %3 {
      %c0_5 = arith.constant 0 : index
      %c0_6 = arith.constant 0 : index
      %13 = vector.load %arg12[%c0_5, %c0_6] : memref<16x32xf32, #tpu.memory_space<vmem>>, vector<16x32xf32>
      tpu.vector_store %arg12[%c0_5, %c0_6], %0 {strides = array<i32>} : memref<16x32xf32, #tpu.memory_space<vmem>>, vector<16x32xf32>,
    } else {
    }
    %4 = arith.index_cast %arg0 : i32 to index
    %5 = arith.index_cast %arg1 : i32 to index
    %6 = memref.load %arg2[%4, %5] : memref<1x4xi32, #tpu.memory_space<smem>>
    %c0_i32_2 = arith.constant 0 : i32
    %7 = arith.cmpi sgt, %6, %c0_i32_2 : i32
    %8 = arith.extui %7 : i1 to i32
    %c0_i32_3 = arith.constant 0 : i32
    %9 = arith.cmpi ne, %8, %c0_i32_3 : i32
    scf.if %9 {
      %13 = arith.truncf %0 : vector<16x32xf32> to vector<16x32xbf16>
      %c0_5 = arith.constant 0 : index
      %c0_6 = arith.constant 0 : index
      %c0_7 = arith.constant 0 : index
      %14 = vector.load %arg5[%c0_5, %c0_6, %c0_7] : memref<1x32x64xbf16, #tpu.memory_space<vmem>>, vector<1x32x64xbf16>
      %15 = vector.shape_cast %14 : vector<1x32x64xbf16> to vector<32x64xbf16>
      %cst = arith.constant dense<0.000000e+00> : vector<16x64xf32>
      %16 = tpu.matmul %13, %15, %cst {dimension_numbers = #tpu.dot_dimension_numbers<[1], [0], [0], [1], [0, 0, 1, 1], [], []>} : vector<16x32xbf16>, vector<32x64xbf16>, vector<16x64xf32> -> vector<16x64xf32>
      %c0_8 = arith.constant 0 : index
      %c0_9 = arith.constant 0 : index
      %c0_10 = arith.constant 0 : index
      %17 = vector.load %arg6[%c0_8, %c0_9, %c0_10] : memref<1x1x64xf32, #tpu.memory_space<vmem>>, vector<1x1x64xf32>
      %18 = vector.shape_cast %17 : vector<1x1x64xf32> to vector<1x64xf32>
      %19 = vector.broadcast %18 : vector<1x64xf32> to vector<16x64xf32>
      %20 = arith.addf %16, %19 : vector<16x64xf32>
      %cst_11 = arith.constant 0.000000e+00 : f32
      %21 = vector.broadcast %cst_11 : f32 to vector<16x64xf32>
      %22 = arith.maximumf %20, %21 : vector<16x64xf32>
      %23 = arith.truncf %22 : vector<16x64xf32> to vector<16x64xbf16>
      %c0_12 = arith.constant 0 : index
      %c0_13 = arith.constant 0 : index
      %c0_14 = arith.constant 0 : index
      %24 = vector.load %arg7[%c0_12, %c0_13, %c0_14] : memref<1x64x32xbf16, #tpu.memory_space<vmem>>, vector<1x64x32xbf16>
      %25 = vector.shape_cast %24 : vector<1x64x32xbf16> to vector<64x32xbf16>
      %cst_15 = arith.constant dense<0.000000e+00> : vector<16x32xf32>
      %26 = tpu.matmul %23, %25, %cst_15 {dimension_numbers = #tpu.dot_dimension_numbers<[1], [0], [0], [1], [0, 0, 1, 1], [], []>} : vector<16x64xbf16>, vector<64x32xbf16>, vector<16x32xf32> -> vector<16x32xf32>
      %c0_16 = arith.constant 0 : index
      %c0_17 = arith.constant 0 : index
      %c0_18 = arith.constant 0 : index
      %27 = vector.load %arg8[%c0_16, %c0_17, %c0_18] : memref<1x1x32xf32, #tpu.memory_space<vmem>>, vector<1x1x32xf32>
      %28 = vector.shape_cast %27 : vector<1x1x32xf32> to vector<1x32xf32>
      %29 = vector.broadcast %28 : vector<1x32xf32> to vector<16x32xf32>
      %30 = arith.addf %26, %29 : vector<16x32xf32>
      %c0_19 = arith.constant 0 : index
      %c0_20 = arith.constant 0 : index
      %31 = vector.load %arg12[%c0_19, %c0_20] : memref<16x32xf32, #tpu.memory_space<vmem>>, vector<16x32xf32>
      %c0_21 = arith.constant 0 : index
      %c0_22 = arith.constant 0 : index
      %c0_23 = arith.constant 0 : index
      %32 = vector.load %arg4[%c0_21, %c0_22, %c0_23] : memref<1x16x1xf32, #tpu.memory_space<vmem>>, vector<1x16x1xf32>
      %33 = vector.shape_cast %32 : vector<1x16x1xf32> to vector<16x1xf32>
      %34 = vector.broadcast %33 : vector<16x1xf32> to vector<16x32xf32>
      %35 = arith.mulf %34, %30 : vector<16x32xf32>
      %36 = arith.addf %31, %35 : vector<16x32xf32>
      %c0_24 = arith.constant 0 : index
      %c0_25 = arith.constant 0 : index
      %37 = vector.load %arg12[%c0_24, %c0_25] : memref<16x32xf32, #tpu.memory_space<vmem>>, vector<16x32xf32>
      tpu.vector_store %arg12[%c0_24, %c0_25], %36 {strides = array<i32>} : memref<16x32xf32, #tpu.memory_space<vmem>>, vector<16x32xf32>,
    } else {
    }
    %c3_i32 = arith.constant 3 : i32
    %10 = arith.cmpi eq, %arg1, %c3_i32 : i32
    %11 = arith.extui %10 : i1 to i32
    %c0_i32_4 = arith.constant 0 : i32
    %12 = arith.cmpi ne, %11, %c0_i32_4 : i32
    scf.if %12 {
      %c0_5 = arith.constant 0 : index
      %c0_6 = arith.constant 0 : index
      %13 = vector.load %arg12[%c0_5, %c0_6] : memref<16x32xf32, #tpu.memory_space<vmem>>, vector<16x32xf32>
      %cst = arith.constant dense<0.000000e+00> : vector<16xf32>
      %14 = vector.multi_reduction <add>, %13, %cst [1] : vector<16x32xf32> to vector<16xf32>
      %15 = vector.shape_cast %14 : vector<16xf32> to vector<16x1xf32>
      %cst_7 = arith.constant 3.200000e+01 : f32
      %16 = vector.broadcast %cst_7 : f32 to vector<16x1xf32>
      %17 = arith.divf %15, %16 : vector<16x1xf32>
      %18 = vector.broadcast %17 : vector<16x1xf32> to vector<16x32xf32>
      %19 = arith.subf %13, %18 : vector<16x32xf32>
      %20 = arith.mulf %19, %19 : vector<16x32xf32>
      %cst_8 = arith.constant dense<0.000000e+00> : vector<16xf32>
      %21 = vector.multi_reduction <add>, %20, %cst_8 [1] : vector<16x32xf32> to vector<16xf32>
      %22 = vector.shape_cast %21 : vector<16xf32> to vector<16x1xf32>
      %cst_9 = arith.constant 3.200000e+01 : f32
      %23 = vector.broadcast %cst_9 : f32 to vector<16x1xf32>
      %24 = arith.divf %22, %23 : vector<16x1xf32>
      %25 = vector.broadcast %17 : vector<16x1xf32> to vector<16x32xf32>
      %26 = arith.subf %13, %25 : vector<16x32xf32>
      %cst_10 = arith.constant 9.99999974E-6 : f32
      %27 = vector.broadcast %cst_10 : f32 to vector<16x1xf32>
      %28 = arith.addf %24, %27 : vector<16x1xf32>
      %29 = math.rsqrt %28 : vector<16x1xf32>
      %30 = vector.broadcast %29 : vector<16x1xf32> to vector<16x32xf32>
      %31 = arith.mulf %26, %30 : vector<16x32xf32>
      %c0_11 = arith.constant 0 : index
      %c0_12 = arith.constant 0 : index
      %32 = vector.load %arg9[%c0_11, %c0_12] : memref<1x32xf32, #tpu.memory_space<vmem>>, vector<1x32xf32>
      %33 = vector.broadcast %32 : vector<1x32xf32> to vector<16x32xf32>
      %34 = arith.mulf %31, %33 : vector<16x32xf32>
      %c0_13 = arith.constant 0 : index
      %c0_14 = arith.constant 0 : index
      %35 = vector.load %arg10[%c0_13, %c0_14] : memref<1x32xf32, #tpu.memory_space<vmem>>, vector<1x32xf32>
      %36 = vector.broadcast %35 : vector<1x32xf32> to vector<16x32xf32>
      %37 = arith.addf %34, %36 : vector<16x32xf32>
      %c0_15 = arith.constant 0 : index
      %c0_16 = arith.constant 0 : index
      %38 = vector.load %arg11[%c0_15, %c0_16] : memref<16x32xf32, #tpu.memory_space<vmem>>, vector<16x32xf32>
      tpu.vector_store %arg11[%c0_15, %c0_16], %37 {strides = array<i32>} : memref<16x32xf32, #tpu.memory_space<vmem>>, vector<16x32xf32>,
    } else {
    }
    return
  }
  func.func @transform_0(%arg0: i32, %arg1: i32, %arg2: memref<1x4xi32, #tpu.memory_space<smem>>) -> (i32, i32) {
    %c0_i32 = arith.constant 0 : i32
    %c0_i32_0 = arith.constant 0 : i32
    return %arg0, %c0_i32 : i32, i32
  }
  func.func @transform_1(%arg0: i32, %arg1: i32, %arg2: memref<1x4xi32, #tpu.memory_space<smem>>) -> (i32, i32, i32) {
    %c0_i32 = arith.constant 0 : i32
    %c0_i32_0 = arith.constant 0 : i32
    return %arg1, %arg0, %c0_i32 : i32, i32, i32
  }
  func.func @transform_2(%arg0: i32, %arg1: i32, %arg2: memref<1x4xi32, #tpu.memory_space<smem>>) -> (i32, i32, i32) {
    %c0_i32 = arith.constant 0 : i32
    %c0_i32_0 = arith.constant 0 : i32
    %c0_i32_1 = arith.constant 0 : i32
    return %arg1, %c0_i32, %c0_i32_0 : i32, i32, i32
  }
  func.func @transform_3(%arg0: i32, %arg1: i32, %arg2: memref<1x4xi32, #tpu.memory_space<smem>>) -> (i32, i32, i32) {
    %c0_i32 = arith.constant 0 : i32
    %c0_i32_0 = arith.constant 0 : i32
    %c0_i32_1 = arith.constant 0 : i32
    return %arg1, %c0_i32, %c0_i32_0 : i32, i32, i32
  }
  func.func @transform_4(%arg0: i32, %arg1: i32, %arg2: memref<1x4xi32, #tpu.memory_space<smem>>) -> (i32, i32, i32) {
    %c0_i32 = arith.constant 0 : i32
    %c0_i32_0 = arith.constant 0 : i32
    %c0_i32_1 = arith.constant 0 : i32
    return %arg1, %c0_i32, %c0_i32_0 : i32, i32, i32
  }
  func.func @transform_5(%arg0: i32, %arg1: i32, %arg2: memref<1x4xi32, #tpu.memory_space<smem>>) -> (i32, i32, i32) {
    %c0_i32 = arith.constant 0 : i32
    %c0_i32_0 = arith.constant 0 : i32
    %c0_i32_1 = arith.constant 0 : i32
    return %arg1, %c0_i32, %c0_i32_0 : i32, i32, i32
  }
  func.func @transform_6(%arg0: i32, %arg1: i32, %arg2: memref<1x4xi32, #tpu.memory_space<smem>>) -> (i32, i32) {
    %c0_i32 = arith.constant 0 : i32
    %c0_i32_0 = arith.constant 0 : i32
    %c0_i32_1 = arith.constant 0 : i32
    return %c0_i32, %c0_i32_0 : i32, i32
  }
  func.func @transform_7(%arg0: i32, %arg1: i32, %arg2: memref<1x4xi32, #tpu.memory_space<smem>>) -> (i32, i32) {
    %c0_i32 = arith.constant 0 : i32
    %c0_i32_0 = arith.constant 0 : i32
    %c0_i32_1 = arith.constant 0 : i32
    return %c0_i32, %c0_i32_0 : i32, i32
  }
  func.func @transform_8(%arg0: i32, %arg1: i32, %arg2: memref<1x4xi32, #tpu.memory_space<smem>>) -> (i32, i32) {
    %c0_i32 = arith.constant 0 : i32
    %c0_i32_0 = arith.constant 0 : i32
    return %arg0, %c0_i32 : i32, i32
  }
}

</mosaic_0001>

<llo_original>
// kernel: transformer_moe_layer.3
$region0: #{transformer_moe_layer.3}
  #allocation0 [shape = 'u32[]', space=smem, size = 0x4, offset = 0x4, fixed_abs, tag = 'smem constant byte address 0x4 - core index']
  #allocation1 [shape = 'u32[144,128]{1,0:T(1,128)}', space=vmem, size = 0x12000, scoped, tag = 'internal scratch']
  #allocation2 [shape = 'f32[16,32]{1,0:T(8,128)}', space=vmem, size = 0x2000, scoped, tag = 'scratch operand']
  #allocation3 [shape = 's32[1]{0}', space=sflag, size = 0x4, scoped, tag = 'scoped memory for transformer_moe_layer.3']
  #allocation4 [shape = 'u8[512]{0}', space=smem, size = 0x200, scoped, tag = 'prefetched SMEM operand 0']
  %s0 = inlined_call_operand.vmem [shape: s32[1,4], index: 0, kind: input, shape index: {}]
  %s1 = inlined_call_operand.vmem [shape: f32[16,32], index: 1, kind: input, shape index: {}]
  %s2 = inlined_call_operand.vmem [shape: f32[4,16,1], index: 2, kind: input, shape index: {}]
  %s3 = inlined_call_operand.vmem [shape: bf16[4,32,64], index: 3, kind: input, shape index: {}]
  %s4 = inlined_call_operand.vmem [shape: f32[4,1,64], index: 4, kind: input, shape index: {}]
  %s5 = inlined_call_operand.vmem [shape: bf16[4,64,32], index: 5, kind: input, shape index: {}]
  %s6 = inlined_call_operand.vmem [shape: f32[4,1,32], index: 6, kind: input, shape index: {}]
  %s7 = inlined_call_operand.vmem [shape: f32[1,32], index: 7, kind: input, shape index: {}]
  %s8 = inlined_call_operand.vmem [shape: f32[1,32], index: 8, kind: input, shape index: {}]
  %s9 = inlined_call_operand.hbm [shape: f32[16,32], index: 9, kind: output, shape index: {}]
  %s10 = sld [smem:[#allocation0]]
  $region77: #{transformer_moe_layer.3} parent=0
    _
  %s12 = ssub.s32 1, %s10
  %s13 = scalar_select 0, %s12, %s10
  %s14 = sshll.u32 %s0, 4
  %s15 = int_to_ptr.vmem [resolvable:$true] %s14
  %17 = dma.vmem_to_smem %s15, 16, [#allocation4], [#allocation3]
  %18 = dma.done [#allocation3], 16
  %19 = sfence
  $region1: #{transformer_moe_layer.3} parent=0
    #allocation5 [shape = 'u8[8192]{0}', space=vmem, size = 0x2000, scoped, tag = 'output window, operand 0, single buffered']
    #allocation6 [shape = 's32[2]{0}', space=sflag, size = 0x8, scoped, tag = 'scoped memory for transformer_moe_layer.3']
    %20 = vsyncpa [#allocation6], 0
    loop: start=0, step=1, limit=6
    $region2: #{transformer_moe_layer.3} parent=1 // loop_pre_header
      _
    $region3: #{transformer_moe_layer.3} parent=1 // loop_header
      %s22 = sphi 0, %s26
      %p23 = scmp.ge.s32.totalorder %s22, 6
      %s29 = sphi 0, %s41
      %s30 = sphi 0, %s37
      %s31 = sphi 0, %s29
      %s32 = sphi 0, %s30
      %s33 = sphi 0, %s31
      %s34 = sphi 0, %s32
      %s44 = sphi 0, %s46
      %s47 = sphi 0, %s44
      %s48 = sphi 0, %s47
      %s64 = sphi 0, %s48
      %s72 = sphi 0, %s74
      %s75 = sphi 0, %s72
      %s76 = sphi 0, %s75
      %s92 = sphi 0, %s76
      %s98 = sphi 0, %s100
      %s101 = sphi 0, %s98
      %s102 = sphi 0, %s101
      %s118 = sphi 0, %s102
      %s124 = sphi 0, %s126
      %s127 = sphi 0, %s124
      %s128 = sphi 0, %s127
      %s144 = sphi 0, %s128
      %s150 = sphi 0, %s152
      %s153 = sphi 0, %s150
      %s154 = sphi 0, %s153
      %s170 = sphi 0, %s154
      %s176 = sphi 0, %s178
      %s179 = sphi 0, %s176
      %s180 = sphi 0, %s179
      %s196 = sphi 0, %s180
      %s200 = sphi 0, %s200
      %s202 = sphi 0, %s200
      %s203 = sphi 0, %s202
      %s217 = sphi 0, %s203
      %s221 = sphi 0, %s221
      %s223 = sphi 0, %s221
      %s224 = sphi 0, %s223
      %s238 = sphi 0, %s224
      %s244 = sphi 0, %s246
      %s247 = sphi 0, %s244
      %s248 = sphi 0, %s247
      %s264 = sphi 0, %s248
    $region4: #{transformer_moe_layer.3} parent=1 // loop_header_branch
      %25 = sbr.rel (%p23) target = $region8
    $region5: #{transformer_moe_layer.3} parent=1 // loop_body
      %s27 = ssub.s32 %s22, 1
      %s28 = ssub.s32 %s22, 2
      %s35 = sadd.s32 1, %s30
      %p36 = scmp.ge.s32.totalorder %s35, 4
      %s37 = scalar_select %p36, 0, %s35
      %s38 = sadd.s32 1, %s29
      %s39 = scalar_select %p36, %s38, %s29
      %p40 = scmp.ge.s32.totalorder %s39, 1
      %s41 = scalar_select %p40, 0, %s39
      %s42 = ssub.s32 %s29, %s41
      %p43 = scmp.eq.s32.totalorder %s42, 0
      %s45 = sadd.s32 %s44, 1
      %s46 = scalar_select %p43, %s44, %s45
      %p49 = pneg %p43
      %p50 = scmp.eq.s32.totalorder %s22, 3
      %p51 = por %p49, %p50
      %p52 = scmp.ne.s32.totalorder %s44, %s47
      %p53 = scmp.eq.s32.totalorder %s22, 0
      %p54 = por %p52, %p53
      %p55 = scmp.ne.s32.totalorder %s44, %s47
      %p56 = scmp.eq.s32.totalorder %s27, 3
      %p57 = por %p55, %p56
      %p58 = scmp.ne.s32.totalorder %s47, %s48
      %p59 = scmp.eq.s32.totalorder %s27, 0
      %p60 = por %p58, %p59
      %p61 = scmp.ne.s32.totalorder %s47, %s48
      %p62 = scmp.eq.s32.totalorder %s28, 3
      %p63 = por %p61, %p62
      %p65 = scmp.ne.s32.totalorder %s48, %s64
      %p66 = scmp.eq.s32.totalorder %s28, 0
      %p67 = por %p65, %p66
      %s68 = ssub.s32 %s30, %s37
      %s69 = ssub.s32 %s29, %s41
      %s70 = sor.u32 %s68, %s69
      %p71 = scmp.eq.s32.totalorder %s70, 0
      %s73 = sadd.s32 %s72, 1
      %s74 = scalar_select %p71, %s72, %s73
      %p77 = pneg %p71
      %p78 = scmp.eq.s32.totalorder %s22, 3
      %p79 = por %p77, %p78
      %p80 = scmp.ne.s32.totalorder %s72, %s75
      %p81 = scmp.eq.s32.totalorder %s22, 0
      %p82 = por %p80, %p81
      %p83 = scmp.ne.s32.totalorder %s72, %s75
      %p84 = scmp.eq.s32.totalorder %s27, 3
      %p85 = por %p83, %p84
      %p86 = scmp.ne.s32.totalorder %s75, %s76
      %p87 = scmp.eq.s32.totalorder %s27, 0
      %p88 = por %p86, %p87
      %p89 = scmp.ne.s32.totalorder %s75, %s76
      %p90 = scmp.eq.s32.totalorder %s28, 3
      %p91 = por %p89, %p90
      %p93 = scmp.ne.s32.totalorder %s76, %s92
      %p94 = scmp.eq.s32.totalorder %s28, 0
      %p95 = por %p93, %p94
      %s96 = ssub.s32 %s30, %s37
      %p97 = scmp.eq.s32.totalorder %s96, 0
      %s99 = sadd.s32 %s98, 1
      %s100 = scalar_select %p97, %s98, %s99
      %p103 = pneg %p97
      %p104 = scmp.eq.s32.totalorder %s22, 3
      %p105 = por %p103, %p104
      %p106 = scmp.ne.s32.totalorder %s98, %s101
      %p107 = scmp.eq.s32.totalorder %s22, 0
      %p108 = por %p106, %p107
      %p109 = scmp.ne.s32.totalorder %s98, %s101
      %p110 = scmp.eq.s32.totalorder %s27, 3
      %p111 = por %p109, %p110
      %p112 = scmp.ne.s32.totalorder %s101, %s102
      %p113 = scmp.eq.s32.totalorder %s27, 0
      %p114 = por %p112, %p113
      %p115 = scmp.ne.s32.totalorder %s101, %s102
      %p116 = scmp.eq.s32.totalorder %s28, 3
      %p117 = por %p115, %p116
      %p119 = scmp.ne.s32.totalorder %s102, %s118
      %p120 = scmp.eq.s32.totalorder %s28, 0
      %p121 = por %p119, %p120
      %s122 = ssub.s32 %s30, %s37
      %p123 = scmp.eq.s32.totalorder %s122, 0
      %s125 = sadd.s32 %s124, 1
      %s126 = scalar_select %p123, %s124, %s125
      %p129 = pneg %p123
      %p130 = scmp.eq.s32.totalorder %s22, 3
      %p131 = por %p129, %p130
      %p132 = scmp.ne.s32.totalorder %s124, %s127
      %p133 = scmp.eq.s32.totalorder %s22, 0
      %p134 = por %p132, %p133
      %p135 = scmp.ne.s32.totalorder %s124, %s127
      %p136 = scmp.eq.s32.totalorder %s27, 3
      %p137 = por %p135, %p136
      %p138 = scmp.ne.s32.totalorder %s127, %s128
      %p139 = scmp.eq.s32.totalorder %s27, 0
      %p140 = por %p138, %p139
      %p141 = scmp.ne.s32.totalorder %s127, %s128
      %p142 = scmp.eq.s32.totalorder %s28, 3
      %p143 = por %p141, %p142
      %p145 = scmp.ne.s32.totalorder %s128, %s144
      %p146 = scmp.eq.s32.totalorder %s28, 0
      %p147 = por %p145, %p146
      %s148 = ssub.s32 %s30, %s37
      %p149 = scmp.eq.s32.totalorder %s148, 0
      %s151 = sadd.s32 %s150, 1
      %s152 = scalar_select %p149, %s150, %s151
      %p155 = pneg %p149
      %p156 = scmp.eq.s32.totalorder %s22, 3
      %p157 = por %p155, %p156
      %p158 = scmp.ne.s32.totalorder %s150, %s153
      %p159 = scmp.eq.s32.totalorder %s22, 0
      %p160 = por %p158, %p159
      %p161 = scmp.ne.s32.totalorder %s150, %s153
      %p162 = scmp.eq.s32.totalorder %s27, 3
      %p163 = por %p161, %p162
      %p164 = scmp.ne.s32.totalorder %s153, %s154
      %p165 = scmp.eq.s32.totalorder %s27, 0
      %p166 = por %p164, %p165
      %p167 = scmp.ne.s32.totalorder %s153, %s154
      %p168 = scmp.eq.s32.totalorder %s28, 3
      %p169 = por %p167, %p168
      %p171 = scmp.ne.s32.totalorder %s154, %s170
      %p172 = scmp.eq.s32.totalorder %s28, 0
      %p173 = por %p171, %p172
      %s174 = ssub.s32 %s30, %s37
      %p175 = scmp.eq.s32.totalorder %s174, 0
      %s177 = sadd.s32 %s176, 1
      %s178 = scalar_select %p175, %s176, %s177
      %p181 = pneg %p175
      %p182 = scmp.eq.s32.totalorder %s22, 3
      %p183 = por %p181, %p182
      %p184 = scmp.ne.s32.totalorder %s176, %s179
      %p185 = scmp.eq.s32.totalorder %s22, 0
      %p186 = por %p184, %p185
      %p187 = scmp.ne.s32.totalorder %s176, %s179
      %p188 = scmp.eq.s32.totalorder %s27, 3
      %p189 = por %p187, %p188
      %p190 = scmp.ne.s32.totalorder %s179, %s180
      %p191 = scmp.eq.s32.totalorder %s27, 0
      %p192 = por %p190, %p191
      %p193 = scmp.ne.s32.totalorder %s179, %s180
      %p194 = scmp.eq.s32.totalorder %s28, 3
      %p195 = por %p193, %p194
      %p197 = scmp.ne.s32.totalorder %s180, %s196
      %p198 = scmp.eq.s32.totalorder %s28, 0
      %p199 = por %p197, %p198
      %s201 = sadd.s32 %s200, 1
      %p204 = scmp.eq.s32.totalorder %s22, 3
      %p205 = scmp.ne.s32.totalorder %s200, %s202
      %p206 = scmp.eq.s32.totalorder %s22, 0
      %p207 = por %p205, %p206
      %p208 = scmp.ne.s32.totalorder %s200, %s202
      %p209 = scmp.eq.s32.totalorder %s27, 3
      %p210 = por %p208, %p209
      %p211 = scmp.ne.s32.totalorder %s202, %s203
      %p212 = scmp.eq.s32.totalorder %s27, 0
      %p213 = por %p211, %p212
      %p214 = scmp.ne.s32.totalorder %s202, %s203
      %p215 = scmp.eq.s32.totalorder %s28, 3
      %p216 = por %p214, %p215
      %p218 = scmp.ne.s32.totalorder %s203, %s217
      %p219 = scmp.eq.s32.totalorder %s28, 0
      %p220 = por %p218, %p219
      %s222 = sadd.s32 %s221, 1
      %p225 = scmp.eq.s32.totalorder %s22, 3
      %p226 = scmp.ne.s32.totalorder %s221, %s223
      %p227 = scmp.eq.s32.totalorder %s22, 0
      %p228 = por %p226, %p227
      %p229 = scmp.ne.s32.totalorder %s221, %s223
      %p230 = scmp.eq.s32.totalorder %s27, 3
      %p231 = por %p229, %p230
      %p232 = scmp.ne.s32.totalorder %s223, %s224
      %p233 = scmp.eq.s32.totalorder %s27, 0
      %p234 = por %p232, %p233
      %p235 = scmp.ne.s32.totalorder %s223, %s224
      %p236 = scmp.eq.s32.totalorder %s28, 3
      %p237 = por %p235, %p236
      %p239 = scmp.ne.s32.totalorder %s224, %s238
      %p240 = scmp.eq.s32.totalorder %s28, 0
      %p241 = por %p239, %p240
      %s242 = ssub.s32 %s29, %s41
      %p243 = scmp.eq.s32.totalorder %s242, 0
      %s245 = sadd.s32 %s244, 1
      %s246 = scalar_select %p243, %s244, %s245
      %p249 = pneg %p243
      %p250 = scmp.eq.s32.totalorder %s22, 3
      %p251 = por %p249, %p250
      %p252 = scmp.ne.s32.totalorder %s244, %s247
      %p253 = scmp.eq.s32.totalorder %s22, 0
      %p254 = por %p252, %p253
      %p255 = scmp.ne.s32.totalorder %s244, %s247
      %p256 = scmp.eq.s32.totalorder %s27, 3
      %p257 = por %p255, %p256
      %p258 = scmp.ne.s32.totalorder %s247, %s248
      %p259 = scmp.eq.s32.totalorder %s27, 0
      %p260 = por %p258, %p259
      %p261 = scmp.ne.s32.totalorder %s247, %s248
      %p262 = scmp.eq.s32.totalorder %s28, 3
      %p263 = por %p261, %p262
      %p265 = scmp.ne.s32.totalorder %s248, %s264
      %p266 = scmp.eq.s32.totalorder %s28, 0
      %p267 = por %p265, %p266
      %p268 = scmp.le.s32.totalorder 1, %s22
      %p269 = scmp.lt.s32.totalorder %s22, 5
      %p270 = pnand %p268, %p269
      %p271 = pneg %p270
      // Predicated region
      $region9: #{transformer_moe_layer.3} parent=5 // pred_check
        _
      $region10: #{transformer_moe_layer.3} parent=5 // pred_check_branch
        %273 = sbr.rel (%p270) target = $region12
      $region11: #{transformer_moe_layer.3} parent=5 // pred_region
        %s274 = ssub.s32 %s22, 1
        // Predicated region
        $region13: #{transformer_moe_layer.3} parent=11 // pred_check
          %p275 = pneg %p60
        $region14: #{transformer_moe_layer.3} parent=11 // pred_check_branch
          %277 = sbr.rel (%p275) target = $region16
        $region15: #{transformer_moe_layer.3} parent=11 // pred_region
          %s278 = smul.u32 2, %s31
          %p279 = scmp.lt.s32.totalorder %s278, 1
          %s280 = scalar_select %p279, %s278, 1
          %s281 = smul.addr %s280, 8
          %s282 = scalar_lea.vmem %s1, %s281
          %s283 = smul.u32 2, %s31
        $region16: #{transformer_moe_layer.3} parent=11 // pred_fallthru
          _
        // Predicated region
        $region17: #{transformer_moe_layer.3} parent=11 // pred_check
          %p284 = pneg %p213
        $region18: #{transformer_moe_layer.3} parent=11 // pred_check_branch
          %286 = sbr.rel (%p284) target = $region20
        $region19: #{transformer_moe_layer.3} parent=11 // pred_region
          _
        $region20: #{transformer_moe_layer.3} parent=11 // pred_fallthru
          _
        // Predicated region
        $region21: #{transformer_moe_layer.3} parent=11 // pred_check
          %p287 = pneg %p234
        $region22: #{transformer_moe_layer.3} parent=11 // pred_check_branch
          %289 = sbr.rel (%p287) target = $region24
        $region23: #{transformer_moe_layer.3} parent=11 // pred_region
          _
        $region24: #{transformer_moe_layer.3} parent=11 // pred_fallthru
          _
      $region12: #{transformer_moe_layer.3} parent=5 // pred_fallthru
        _
      %p290 = scmp.lt.s32.totalorder %s22, 4
      // Predicated region
      $region25: #{transformer_moe_layer.3} parent=5 // pred_check
        %p291 = pneg %p290
      $region26: #{transformer_moe_layer.3} parent=5 // pred_check_branch
        %293 = sbr.rel (%p291) target = $region28
      $region27: #{transformer_moe_layer.3} parent=5 // pred_region
        // Predicated region
        $region29: #{transformer_moe_layer.3} parent=27 // pred_check
          %p294 = pneg %p82
        $region30: #{transformer_moe_layer.3} parent=27 // pred_check_branch
          %296 = sbr.rel (%p294) target = $region32
        $region31: #{transformer_moe_layer.3} parent=27 // pred_region
          %s297 = smul.u32 2, %s29
          %p298 = scmp.lt.s32.totalorder %s30, 3
          %s299 = scalar_select %p298, %s30, 3
          %p300 = scmp.lt.s32.totalorder %s297, 1
          %s301 = scalar_select %p300, %s297, 1
          %s302 = smul.addr %s299, 2
          %s303 = sadd.s32 %s301, %s302
          %s304 = smul.addr %s303, 8
          %s305 = scalar_lea.vmem %s2, %s304
          %s306 = smul.u32 2, %s29
        $region32: #{transformer_moe_layer.3} parent=27 // pred_fallthru
          _
        // Predicated region
        $region33: #{transformer_moe_layer.3} parent=27 // pred_check
          %p307 = pneg %p108
        $region34: #{transformer_moe_layer.3} parent=27 // pred_check_branch
          %309 = sbr.rel (%p307) target = $region36
        $region35: #{transformer_moe_layer.3} parent=27 // pred_region
          %p310 = scmp.lt.s32.totalorder %s30, 3
          %s311 = scalar_select %p310, %s30, 3
          %s312 = smul.addr %s311, 4
          %s313 = smul.addr %s312, 4
          %s314 = scalar_lea.vmem %s3, %s313
        $region36: #{transformer_moe_layer.3} parent=27 // pred_fallthru
          _
        // Predicated region
        $region37: #{transformer_moe_layer.3} parent=27 // pred_check
          %p315 = pneg %p134
        $region38: #{transformer_moe_layer.3} parent=27 // pred_check_branch
          %317 = sbr.rel (%p315) target = $region40
        $region39: #{transformer_moe_layer.3} parent=27 // pred_region
          %p318 = scmp.lt.s32.totalorder %s30, 3
          %s319 = scalar_select %p318, %s30, 3
          %s320 = scalar_lea.vmem %s4, %s319
        $region40: #{transformer_moe_layer.3} parent=27 // pred_fallthru
          _
        // Predicated region
        $region41: #{transformer_moe_layer.3} parent=27 // pred_check
          %p321 = pneg %p160
        $region42: #{transformer_moe_layer.3} parent=27 // pred_check_branch
          %323 = sbr.rel (%p321) target = $region44
        $region43: #{transformer_moe_layer.3} parent=27 // pred_region
          %p324 = scmp.lt.s32.totalorder %s30, 3
          %s325 = scalar_select %p324, %s30, 3
          %s326 = smul.addr %s325, 8
          %s327 = smul.addr %s326, 4
          %s328 = scalar_lea.vmem %s5, %s327
        $region44: #{transformer_moe_layer.3} parent=27 // pred_fallthru
          _
        // Predicated region
        $region45: #{transformer_moe_layer.3} parent=27 // pred_check
          %p329 = pneg %p186
        $region46: #{transformer_moe_layer.3} parent=27 // pred_check_branch
          %331 = sbr.rel (%p329) target = $region48
        $region47: #{transformer_moe_layer.3} parent=27 // pred_region
          %p332 = scmp.lt.s32.totalorder %s30, 3
          %s333 = scalar_select %p332, %s30, 3
          %s334 = scalar_lea.vmem %s6, %s333
        $region48: #{transformer_moe_layer.3} parent=27 // pred_fallthru
          _
      $region28: #{transformer_moe_layer.3} parent=5 // pred_fallthru
        _
      %p335 = scmp.le.s32.totalorder 1, %s22
      %p336 = scmp.lt.s32.totalorder %s22, 5
      %p337 = pnand %p335, %p336
      %p338 = pneg %p337
      // Predicated region
      $region49: #{transformer_moe_layer.3} parent=5 // pred_check
        _
      $region50: #{transformer_moe_layer.3} parent=5 // pred_check_branch
        %340 = sbr.rel (%p337) target = $region52
      $region51: #{transformer_moe_layer.3} parent=5 // pred_region
        %s341 = ssub.s32 %s22, 1
        %s342 = smul.u32 2, %s31
        %p343 = scmp.lt.s32.totalorder %s342, 1
        %s344 = scalar_select %p343, %s342, 1
        %s345 = smul.addr %s344, 8
        %s346 = scalar_lea.vmem %s1, %s345
        %p347 = pneg %p60
        %p348 = pneg %p57
        %s349 = smul.u32 2, %s31
        %p350 = scmp.lt.s32.totalorder %s32, 3
        %s351 = scalar_select %p350, %s32, 3
        %p352 = scmp.lt.s32.totalorder %s349, 1
        %s353 = scalar_select %p352, %s349, 1
        %s354 = smul.addr %s351, 2
        %s355 = sadd.s32 %s353, %s354
        %s356 = smul.addr %s355, 8
        %s357 = scalar_lea.vmem %s2, %s356
        %p358 = pneg %p88
        %p359 = pneg %p85
        %p360 = scmp.lt.s32.totalorder %s32, 3
        %s361 = scalar_select %p360, %s32, 3
        %s362 = smul.addr %s361, 4
        %s363 = smul.addr %s362, 4
        %s364 = scalar_lea.vmem %s3, %s363
        %p365 = pneg %p114
        %p366 = pneg %p111
        %p367 = scmp.lt.s32.totalorder %s32, 3
        %s368 = scalar_select %p367, %s32, 3
        %s369 = scalar_lea.vmem %s4, %s368
        %p370 = pneg %p140
        %p371 = pneg %p137
        %p372 = scmp.lt.s32.totalorder %s32, 3
        %s373 = scalar_select %p372, %s32, 3
        %s374 = smul.addr %s373, 8
        %s375 = smul.addr %s374, 4
        %s376 = scalar_lea.vmem %s5, %s375
        %p377 = pneg %p166
        %p378 = pneg %p163
        %p379 = scmp.lt.s32.totalorder %s32, 3
        %s380 = scalar_select %p379, %s32, 3
        %s381 = scalar_lea.vmem %s6, %s380
        %p382 = pneg %p192
        %p383 = pneg %p189
        %p384 = pneg %p213
        %p385 = pneg %p210
        %p386 = pneg %p234
        %p387 = pneg %p231
        %p388 = pneg %p260
        %p389 = pneg %p257
        %s390 = smul.u32 2, %s31
        %p391 = scmp.lt.s32.totalorder %s390, 1
        %s392 = scalar_select %p391, %s390, 1
        %s393 = smul.addr %s392, 8
        %s394 = scalar_lea.vmem %s1, %s393
        %s395 = smul.u32 2, %s31
        %s396 = smul.u32 2, %s31
        %p397 = scmp.lt.s32.totalorder %s32, 3
        %s398 = scalar_select %p397, %s32, 3
        %p399 = scmp.lt.s32.totalorder %s396, 1
        %s400 = scalar_select %p399, %s396, 1
        %s401 = smul.addr %s398, 2
        %s402 = sadd.s32 %s400, %s401
        %s403 = smul.addr %s402, 8
        %s404 = scalar_lea.vmem %s2, %s403
        %s405 = smul.u32 2, %s31
        %p406 = scmp.lt.s32.totalorder %s32, 3
        %s407 = scalar_select %p406, %s32, 3
        %s408 = smul.addr %s407, 4
        %s409 = smul.addr %s408, 4
        %s410 = scalar_lea.vmem %s3, %s409
        %p411 = scmp.lt.s32.totalorder %s32, 3
        %s412 = scalar_select %p411, %s32, 3
        %s413 = scalar_lea.vmem %s4, %s412
        %p414 = scmp.lt.s32.totalorder %s32, 3
        %s415 = scalar_select %p414, %s32, 3
        %s416 = smul.addr %s415, 8
        %s417 = smul.addr %s416, 4
        %s418 = scalar_lea.vmem %s5, %s417
        %p419 = scmp.lt.s32.totalorder %s32, 3
        %s420 = scalar_select %p419, %s32, 3
        %s421 = scalar_lea.vmem %s6, %s420
        %s422 = smul.u32 2, %s31
        %v424 = vld [vmem:[%s394] sm:$0xff]
        %v425 = vld [vmem:[%s394 + $0x8] sm:$0xff]
        %p426 = scmp.eq.s32.totalorder %s32, 0
        // Predicated region
        $region53: #{transformer_moe_layer.3} parent=51 // pred_check
          %p427 = pneg %p426
        $region54: #{transformer_moe_layer.3} parent=51 // pred_check_branch
          %429 = sbr.rel (%p427) target = $region56
        $region55: #{transformer_moe_layer.3} parent=51 // pred_region
          %vm430 = vcmask 261120
          %431 = vst.msk [vmem:[#allocation2] sm:$0xff] %vm430, %v424
          %432 = vst.msk [vmem:[#allocation2 + $0x8] sm:$0xff] %vm430, %v425
        $region56: #{transformer_moe_layer.3} parent=51 // pred_fallthru
          _
        %s433 = sshra.s32 %s32, 7
        %s434 = sand.u32 %s32, 127
        %s435 = sadd.s32 %s433, %s31
        %s436 = smul.u32 %s435, 128
        %s437 = sshra.s32 %s32, 7
        %s438 = sand.u32 %s32, 127
        %s439 = sadd.s32 %s436, %s438
        %s440 = sld [smem:[#allocation4 + %s439]]
        %p441 = scmp.gt.s32.totalorder %s440, 0
        // Predicated region
        $region57: #{transformer_moe_layer.3} parent=51 // pred_check
          %p442 = pneg %p441
        $region58: #{transformer_moe_layer.3} parent=51 // pred_check_branch
          %444 = sbr.rel (%p442) target = $region60
        $region59: #{transformer_moe_layer.3} parent=51 // pred_region
          %v445 = vpack.c.bf16 %v425, %v424
          %v446 = vld [vmem:[%s410] sm:$0xf]
          %v447 = vld [vmem:[%s410 + $0x4] sm:$0xf]
          %v448 = vld [vmem:[%s410 + $0x8] sm:$0xf]
          %v449 = vld [vmem:[%s410 + $0xc] sm:$0xf]
          %v450 = vld [vmem:[%s413] sm:$0x1]
          %v452 = vlaneseq
          %v453 = vshrl.u32 %v452, 7
          %v454 = vsub.s32 0, %v453
          %v455 = vrot.slane %v450, %v454
          %v461 = vunpack.c.l.b16 %v446
          %v462 = vunpack.c.l.b16 %v447
          %v463 = vunpack.c.l.b16 %v448
          %v464 = vunpack.c.l.b16 %v449
          %v465 = vpack.c.b16 %v462, %v461
          %v466 = vpack.c.b16 %v464, %v463
          %vm469 = vcmask 261120
          %v471 = vsel %vm469, %v445, 0
          %473 = vmatprep.subr.bf16.mxu0 0
          %474 = vmatpush1.bf16.msra.mxu0 %v465
          %475 = vmatprep.subr.bf16.mxu0 0
          %476 = vmatpush1.bf16.msra.mxu0 %v466
          %477 = vmatprep.subr.bf16.mxu0 0
          %478 = vmatpush1.bf16.msra.mxu0 0
          %479 = vmatprep.subr.bf16.mxu0 0
          %480 = vmatpush1.bf16.msra.mxu0 0
          %481 = vmatprep.subr.bf16.mxu0 0
          %482 = vmatpush1.bf16.msra.mxu0 0
          %483 = vmatprep.subr.bf16.mxu0 0
          %484 = vmatpush1.bf16.msra.mxu0 0
          %485 = vmatprep.subr.bf16.mxu0 0
          %486 = vmatpush1.bf16.msra.mxu0 0
          %487 = vmatprep.subr.bf16.mxu0 0
          %488 = vmatpush1.bf16.msra.mxu0 0
          %489 = vmatprep.subr.bf16.mxu0 0
          %490 = vmatpush1.bf16.msra.mxu0 0
          %491 = vmatprep.subr.bf16.mxu0 0
          %492 = vmatpush1.bf16.msra.mxu0 0
          %493 = vmatprep.subr.bf16.mxu0 0
          %494 = vmatpush1.bf16.msra.mxu0 0
          %495 = vmatprep.subr.bf16.mxu0 0
          %496 = vmatpush1.bf16.msra.mxu0 0
          %497 = vmatprep.subr.bf16.mxu0 0
          %498 = vmatpush1.bf16.msra.mxu0 0
          %499 = vmatprep.subr.bf16.mxu0 0
          %500 = vmatpush1.bf16.msra.mxu0 0
          %501 = vmatprep.subr.bf16.mxu0 0
          %502 = vmatpush1.bf16.msra.mxu0 0
          %503 = vmatprep.subr.bf16.mxu0 0
          %504 = vmatpush1.bf16.msra.mxu0 0
          %505 = vmatprep.mubr.bf16.mxu0 0
          %506 = vmatmul.mubr.bf16.gmra.mrb[0].mxu0 %v471
          %v507 = vpop.f32.mrb[0].mxu0
          %v508 = vadd.f32 %v455, %v507
          %v509 = vpop.f32.mrb[0].mxu0
          %v510 = vpop.f32.mrb[0].mxu0
          %v511 = vadd.f32 %v455, %v510
          %v512 = vpop.f32.mrb[0].mxu0
          %513 = vdwg.mxu0
          %v514 = vmax.f32 %v508, 0.0
          %v515 = vmax.f32 %v511, 0.0
          %v516 = vpack.c.bf16 %v515, %v514
          %v517 = vld [vmem:[%s418] sm:$0xf]
          %v518 = vld [vmem:[%s418 + $0x4] sm:$0xf]
          %v519 = vld [vmem:[%s418 + $0x8] sm:$0xf]
          %v520 = vld [vmem:[%s418 + $0xc] sm:$0xf]
          %v521 = vld [vmem:[%s418 + $0x10] sm:$0xf]
          %v522 = vld [vmem:[%s418 + $0x14] sm:$0xf]
          %v523 = vld [vmem:[%s418 + $0x18] sm:$0xf]
          %v524 = vld [vmem:[%s418 + $0x1c] sm:$0xf]
          %v525 = vld [vmem:[%s421] sm:$0x1]
          %v527 = vlaneseq
          %v528 = vshrl.u32 %v527, 7
          %v529 = vsub.s32 0, %v528
          %v530 = vrot.slane %v525, %v529
          %v540 = vunpack.c.l.b16 %v517
          %v541 = vunpack.c.l.b16 %v518
          %v542 = vunpack.c.l.b16 %v519
          %v543 = vunpack.c.l.b16 %v520
          %v544 = vunpack.c.l.b16 %v521
          %v545 = vunpack.c.l.b16 %v522
          %v546 = vunpack.c.l.b16 %v523
          %v547 = vunpack.c.l.b16 %v524
          %v548 = vpack.c.b16 %v541, %v540
          %v549 = vpack.c.b16 %v543, %v542
          %v550 = vpack.c.b16 %v545, %v544
          %v551 = vpack.c.b16 %v547, %v546
          %vm556 = vcmask 523264
          %v558 = vsel %vm556, %v516, 0
          %560 = vmatprep.subr.bf16.mxu0 0
          %561 = vmatpush1.bf16.msra.mxu0 %v548
          %562 = vmatprep.subr.bf16.mxu0 0
          %563 = vmatpush1.bf16.msra.mxu0 %v549
          %564 = vmatprep.subr.bf16.mxu0 0
          %565 = vmatpush1.bf16.msra.mxu0 %v550
          %566 = vmatprep.subr.bf16.mxu0 0
          %567 = vmatpush1.bf16.msra.mxu0 %v551
          %568 = vmatprep.subr.bf16.mxu0 0
          %569 = vmatpush1.bf16.msra.mxu0 0
          %570 = vmatprep.subr.bf16.mxu0 0
          %571 = vmatpush1.bf16.msra.mxu0 0
          %572 = vmatprep.subr.bf16.mxu0 0
          %573 = vmatpush1.bf16.msra.mxu0 0
          %574 = vmatprep.subr.bf16.mxu0 0
          %575 = vmatpush1.bf16.msra.mxu0 0
          %576 = vmatprep.subr.bf16.mxu0 0
          %577 = vmatpush1.bf16.msra.mxu0 0
          %578 = vmatprep.subr.bf16.mxu0 0
          %579 = vmatpush1.bf16.msra.mxu0 0
          %580 = vmatprep.subr.bf16.mxu0 0
          %581 = vmatpush1.bf16.msra.mxu0 0
          %582 = vmatprep.subr.bf16.mxu0 0
          %583 = vmatpush1.bf16.msra.mxu0 0
          %584 = vmatprep.subr.bf16.mxu0 0
          %585 = vmatpush1.bf16.msra.mxu0 0
          %586 = vmatprep.subr.bf16.mxu0 0
          %587 = vmatpush1.bf16.msra.mxu0 0
          %588 = vmatprep.subr.bf16.mxu0 0
          %589 = vmatpush1.bf16.msra.mxu0 0
          %590 = vmatprep.subr.bf16.mxu0 0
          %591 = vmatpush1.bf16.msra.mxu0 0
          %592 = vmatprep.mubr.bf16.mxu0 0
          %593 = vmatmul.mubr.bf16.gmra.mrb[0].mxu0 %v558
          %v594 = vpop.f32.mrb[0].mxu0
          %v595 = vadd.f32 %v530, %v594
          %v596 = vpop.f32.mrb[0].mxu0
          %v597 = vpop.f32.mrb[0].mxu0
          %v598 = vadd.f32 %v530, %v597
          %v599 = vpop.f32.mrb[0].mxu0
          %600 = vdwg.mxu0
          %v601 = vld [vmem:[#allocation2] sm:$0xff]
          %v602 = vld [vmem:[#allocation2 + $0x8] sm:$0xff]
          %v603 = vld [vmem:[%s404] sm:$0xff]
          %v604 = vld [vmem:[%s404 + $0x8] sm:$0xff]
          %606 = vset.pattern.permute.xlu0 0
          %607 = vperm.xlu0 %606, %v603
          %v608 = vpop.permute.xlu0 %607
          %611 = vset.pattern.permute.xlu0 0
          %612 = vperm.xlu0 %611, %v604
          %v613 = vpop.permute.xlu0 %612
          %v615 = vmul.f32 %v608, %v595
          %v616 = vmul.f32 %v613, %v598
          %v617 = vadd.f32 %v601, %v615
          %v618 = vadd.f32 %v602, %v616
          %619 = vst.msk [vmem:[#allocation2] sm:$0xff] %vm469, %v617
          %620 = vst.msk [vmem:[#allocation2 + $0x8] sm:$0xff] %vm469, %v618
        $region60: #{transformer_moe_layer.3} parent=51 // pred_fallthru
          _
        %p621 = scmp.eq.s32.totalorder %s32, 3
        // Predicated region
        $region61: #{transformer_moe_layer.3} parent=51 // pred_check
          %p622 = pneg %p621
        $region62: #{transformer_moe_layer.3} parent=51 // pred_check_branch
          %624 = sbr.rel (%p622) target = $region64
        $region63: #{transformer_moe_layer.3} parent=51 // pred_region
          %v625 = vld [vmem:[#allocation2] sm:$0xff]
          %v626 = vld [vmem:[#allocation2 + $0x8] sm:$0xff]
          %vm627 = vcmask 261120
          %v628 = vsel %vm627, %v625, 0.0
          %629 = vadd.xlane.f32.xlu0 %v628
          %v630 = vpop.xlane.xlu0 %629
          %v631 = vsel %vm627, %v626, 0.0
          %632 = vadd.xlane.f32.xlu0 %v631
          %v633 = vpop.xlane.xlu0 %632
          %v634 = vrcp.pop 32.0
          %v635 = vmul.f32 %v630, %v634
          %v636 = vmul.f32 %v633, %v634
          %v637 = vsub.f32 %v625, %v635
          %v638 = vsub.f32 %v626, %v636
          %v639 = vmul.f32 %v637, %v637
          %v640 = vmul.f32 %v638, %v638
          %v641 = vsel %vm627, %v639, 0.0
          %642 = vadd.xlane.f32.xlu0 %v641
          %v643 = vpop.xlane.xlu0 %642
          %v644 = vsel %vm627, %v640, 0.0
          %645 = vadd.xlane.f32.xlu0 %v644
          %v646 = vpop.xlane.xlu0 %645
          %v647 = vmul.f32 %v643, %v634
          %v648 = vmul.f32 %v646, %v634
          %v649 = vadd.f32 %v647, 1e-05
          %v650 = vadd.f32 %v648, 1e-05
          %v651 = vrsqrt.pop %v649
          %v652 = vrsqrt.pop %v650
          %v653 = vmul.f32 %v637, %v651
          %v654 = vmul.f32 %v638, %v652
          %v655 = vld [vmem:[%s7] sm:$0x1]
          %v657 = vlaneseq
          %v658 = vshrl.u32 %v657, 7
          %v659 = vsub.s32 0, %v658
          %v660 = vrot.slane %v655, %v659
          %v662 = vmul.f32 %v653, %v660
          %v663 = vmul.f32 %v654, %v660
          %v664 = vld [vmem:[%s8] sm:$0x1]
          %v666 = vlaneseq
          %v667 = vshrl.u32 %v666, 7
          %v668 = vsub.s32 0, %v667
          %v669 = vrot.slane %v664, %v668
          %v671 = vadd.f32 %v662, %v669
          %v672 = vadd.f32 %v663, %v669
          %673 = vst.msk [vmem:[#allocation5] sm:$0xff] %vm627, %v671
          %674 = vst.msk [vmem:[#allocation5 + $0x8] sm:$0xff] %vm627, %v672
        $region64: #{transformer_moe_layer.3} parent=51 // pred_fallthru
          _
        // Predicated region
        $region65: #{transformer_moe_layer.3} parent=51 // pred_check
          %p675 = pneg %p257
        $region66: #{transformer_moe_layer.3} parent=51 // pred_check_branch
          %677 = sbr.rel (%p675) target = $region68
        $region67: #{transformer_moe_layer.3} parent=51 // pred_region
          %s678 = smul.u32 2, %s31
          %s680 = ssub.s32 256, 256
          %681 = vsyncadd [#allocation6], %s680
          %s682 = smul.addr %s678, 128
          %s683 = scalar_lea.hbm %s9, %s682
          %s684 = sshll.u32 [#allocation5], 4
          %s685 = int_to_ptr.vmem [resolvable:$true] %s684
          %690 = dma.vmem_to_hbm [thread:$0]  %s685, 256, %s683, [#allocation6], 128, 128, 8
        $region68: #{transformer_moe_layer.3} parent=51 // pred_fallthru
          _
        // Predicated region
        $region69: #{transformer_moe_layer.3} parent=51 // pred_check
          %p691 = pneg %p257
        $region70: #{transformer_moe_layer.3} parent=51 // pred_check_branch
          %693 = sbr.rel (%p691) target = $region72
        $region71: #{transformer_moe_layer.3} parent=51 // pred_region
          %694 = dma.done [#allocation6], 256
        $region72: #{transformer_moe_layer.3} parent=51 // pred_fallthru
          _
      $region52: #{transformer_moe_layer.3} parent=5 // pred_fallthru
        _
      %p695 = scmp.le.s32.totalorder 2, %s22
      // Predicated region
      $region73: #{transformer_moe_layer.3} parent=5 // pred_check
        %p696 = pneg %p695
      $region74: #{transformer_moe_layer.3} parent=5 // pred_check_branch
        %698 = sbr.rel (%p696) target = $region76
      $region75: #{transformer_moe_layer.3} parent=5 // pred_region
        %s699 = ssub.s32 %s22, 2
      $region76: #{transformer_moe_layer.3} parent=5 // pred_fallthru
        _
    $region6: #{transformer_moe_layer.3} parent=1 // loop_footer
      %s26 = sadd.s32 1, %s22
    $region7: #{transformer_moe_layer.3} parent=1 // loop_footer_branch
      %21 = sbr.rel target = $region3
    $region8: #{transformer_moe_layer.3} parent=1 // loop_exit
      _
    %700 = vsyncpa [#allocation6], 1
    %s701 = scalar_lea.sflag [#allocation6], 1
    %702 = vsyncpa %s701, 1

// kernel: transformer_moe_layer.2
$region0: #{transformer_moe_layer.2}
  #allocation0 [shape = 'u32[]', space=smem, size = 0x4, offset = 0x4, fixed_abs, tag = 'smem constant byte address 0x4 - core index']
  #allocation1 [shape = 'u32[144,128]{1,0:T(1,128)}', space=vmem, size = 0x12000, scoped, tag = 'internal scratch']
  #allocation2 [shape = 'f32[8,32]{1,0:T(8,128)}', space=vmem, size = 0x1000, scoped, tag = 'scratch operand']
  %s0 = inlined_call_operand.vmem [shape: f32[2,8,32], index: 0, kind: input, shape index: {}]
  %s1 = inlined_call_operand.vmem [shape: bf16[4,32,24], index: 1, kind: input, shape index: {}]
  %s2 = inlined_call_operand.vmem [shape: f32[4,1,24], index: 2, kind: input, shape index: {}]
  %s3 = inlined_call_operand.vmem [shape: bf16[4,8,32], index: 3, kind: input, shape index: {}]
  %s4 = inlined_call_operand.vmem [shape: f32[1,32], index: 4, kind: input, shape index: {}]
  %s5 = inlined_call_operand.vmem [shape: f32[1,32], index: 5, kind: input, shape index: {}]
  %s6 = inlined_call_operand.vmem [shape: f32[1,32], index: 6, kind: input, shape index: {}]
  %s7 = inlined_call_operand.vmem [shape: bf16[32,4], index: 7, kind: input, shape index: {}]
  %s8 = inlined_call_operand.vmem [shape: f32[1,4], index: 8, kind: input, shape index: {}]
  %s9 = inlined_call_operand.vmem [shape: f32[2,8,32], index: 9, kind: output, shape index: {0}]
  %s10 = inlined_call_operand.vmem [shape: f32[2,8,4], index: 10, kind: output, shape index: {1}]
  %11 = xla_tuple %s9, %s10
  %s12 = sld [smem:[#allocation0]]
  $region85: #{transformer_moe_layer.2} parent=0
    _
  %s14 = ssub.s32 1, %s12
  %s15 = scalar_select 0, %s14, %s12
  loop: start=0, step=1, limit=10
  $region2: #{transformer_moe_layer.2} parent=0 // loop_pre_header
    _
  $region3: #{transformer_moe_layer.2} parent=0 // loop_header
    %s17 = sphi 0, %s21
    %p18 = scmp.ge.s32.totalorder %s17, 10
    %s24 = sphi 0, %s36
    %s25 = sphi 0, %s32
    %s26 = sphi 0, %s24
    %s27 = sphi 0, %s25
    %s28 = sphi 0, %s26
    %s29 = sphi 0, %s27
    %s39 = sphi 0, %s41
    %s42 = sphi 0, %s39
    %s43 = sphi 0, %s42
    %s59 = sphi 0, %s43
    %s65 = sphi 0, %s67
    %s68 = sphi 0, %s65
    %s69 = sphi 0, %s68
    %s85 = sphi 0, %s69
    %s91 = sphi 0, %s93
    %s94 = sphi 0, %s91
    %s95 = sphi 0, %s94
    %s111 = sphi 0, %s95
    %s117 = sphi 0, %s119
    %s120 = sphi 0, %s117
    %s121 = sphi 0, %s120
    %s137 = sphi 0, %s121
    %s141 = sphi 0, %s141
    %s143 = sphi 0, %s141
    %s144 = sphi 0, %s143
    %s158 = sphi 0, %s144
    %s162 = sphi 0, %s162
    %s164 = sphi 0, %s162
    %s165 = sphi 0, %s164
    %s179 = sphi 0, %s165
    %s183 = sphi 0, %s183
    %s185 = sphi 0, %s183
    %s186 = sphi 0, %s185
    %s200 = sphi 0, %s186
    %s204 = sphi 0, %s204
    %s206 = sphi 0, %s204
    %s207 = sphi 0, %s206
    %s221 = sphi 0, %s207
    %s225 = sphi 0, %s225
    %s227 = sphi 0, %s225
    %s228 = sphi 0, %s227
    %s242 = sphi 0, %s228
    %s248 = sphi 0, %s250
    %s251 = sphi 0, %s248
    %s252 = sphi 0, %s251
    %s268 = sphi 0, %s252
    %s274 = sphi 0, %s276
    %s277 = sphi 0, %s274
    %s278 = sphi 0, %s277
    %s294 = sphi 0, %s278
  $region4: #{transformer_moe_layer.2} parent=0 // loop_header_branch
    %20 = sbr.rel (%p18) target = $region8
  $region5: #{transformer_moe_layer.2} parent=0 // loop_body
    %s22 = ssub.s32 %s17, 1
    %s23 = ssub.s32 %s17, 2
    %s30 = sadd.s32 1, %s25
    %p31 = scmp.ge.s32.totalorder %s30, 4
    %s32 = scalar_select %p31, 0, %s30
    %s33 = sadd.s32 1, %s24
    %s34 = scalar_select %p31, %s33, %s24
    %p35 = scmp.ge.s32.totalorder %s34, 2
    %s36 = scalar_select %p35, 0, %s34
    %s37 = ssub.s32 %s24, %s36
    %p38 = scmp.eq.s32.totalorder %s37, 0
    %s40 = sadd.s32 %s39, 1
    %s41 = scalar_select %p38, %s39, %s40
    %p44 = pneg %p38
    %p45 = scmp.eq.s32.totalorder %s17, 7
    %p46 = por %p44, %p45
    %p47 = scmp.ne.s32.totalorder %s39, %s42
    %p48 = scmp.eq.s32.totalorder %s17, 0
    %p49 = por %p47, %p48
    %p50 = scmp.ne.s32.totalorder %s39, %s42
    %p51 = scmp.eq.s32.totalorder %s22, 7
    %p52 = por %p50, %p51
    %p53 = scmp.ne.s32.totalorder %s42, %s43
    %p54 = scmp.eq.s32.totalorder %s22, 0
    %p55 = por %p53, %p54
    %p56 = scmp.ne.s32.totalorder %s42, %s43
    %p57 = scmp.eq.s32.totalorder %s23, 7
    %p58 = por %p56, %p57
    %p60 = scmp.ne.s32.totalorder %s43, %s59
    %p61 = scmp.eq.s32.totalorder %s23, 0
    %p62 = por %p60, %p61
    %s63 = ssub.s32 %s25, %s32
    %p64 = scmp.eq.s32.totalorder %s63, 0
    %s66 = sadd.s32 %s65, 1
    %s67 = scalar_select %p64, %s65, %s66
    %p70 = pneg %p64
    %p71 = scmp.eq.s32.totalorder %s17, 7
    %p72 = por %p70, %p71
    %p73 = scmp.ne.s32.totalorder %s65, %s68
    %p74 = scmp.eq.s32.totalorder %s17, 0
    %p75 = por %p73, %p74
    %p76 = scmp.ne.s32.totalorder %s65, %s68
    %p77 = scmp.eq.s32.totalorder %s22, 7
    %p78 = por %p76, %p77
    %p79 = scmp.ne.s32.totalorder %s68, %s69
    %p80 = scmp.eq.s32.totalorder %s22, 0
    %p81 = por %p79, %p80
    %p82 = scmp.ne.s32.totalorder %s68, %s69
    %p83 = scmp.eq.s32.totalorder %s23, 7
    %p84 = por %p82, %p83
    %p86 = scmp.ne.s32.totalorder %s69, %s85
    %p87 = scmp.eq.s32.totalorder %s23, 0
    %p88 = por %p86, %p87
    %s89 = ssub.s32 %s25, %s32
    %p90 = scmp.eq.s32.totalorder %s89, 0
    %s92 = sadd.s32 %s91, 1
    %s93 = scalar_select %p90, %s91, %s92
    %p96 = pneg %p90
    %p97 = scmp.eq.s32.totalorder %s17, 7
    %p98 = por %p96, %p97
    %p99 = scmp.ne.s32.totalorder %s91, %s94
    %p100 = scmp.eq.s32.totalorder %s17, 0
    %p101 = por %p99, %p100
    %p102 = scmp.ne.s32.totalorder %s91, %s94
    %p103 = scmp.eq.s32.totalorder %s22, 7
    %p104 = por %p102, %p103
    %p105 = scmp.ne.s32.totalorder %s94, %s95
    %p106 = scmp.eq.s32.totalorder %s22, 0
    %p107 = por %p105, %p106
    %p108 = scmp.ne.s32.totalorder %s94, %s95
    %p109 = scmp.eq.s32.totalorder %s23, 7
    %p110 = por %p108, %p109
    %p112 = scmp.ne.s32.totalorder %s95, %s111
    %p113 = scmp.eq.s32.totalorder %s23, 0
    %p114 = por %p112, %p113
    %s115 = ssub.s32 %s25, %s32
    %p116 = scmp.eq.s32.totalorder %s115, 0
    %s118 = sadd.s32 %s117, 1
    %s119 = scalar_select %p116, %s117, %s118
    %p122 = pneg %p116
    %p123 = scmp.eq.s32.totalorder %s17, 7
    %p124 = por %p122, %p123
    %p125 = scmp.ne.s32.totalorder %s117, %s120
    %p126 = scmp.eq.s32.totalorder %s17, 0
    %p127 = por %p125, %p126
    %p128 = scmp.ne.s32.totalorder %s117, %s120
    %p129 = scmp.eq.s32.totalorder %s22, 7
    %p130 = por %p128, %p129
    %p131 = scmp.ne.s32.totalorder %s120, %s121
    %p132 = scmp.eq.s32.totalorder %s22, 0
    %p133 = por %p131, %p132
    %p134 = scmp.ne.s32.totalorder %s120, %s121
    %p135 = scmp.eq.s32.totalorder %s23, 7
    %p136 = por %p134, %p135
    %p138 = scmp.ne.s32.totalorder %s121, %s137
    %p139 = scmp.eq.s32.totalorder %s23, 0
    %p140 = por %p138, %p139
    %s142 = sadd.s32 %s141, 1
    %p145 = scmp.eq.s32.totalorder %s17, 7
    %p146 = scmp.ne.s32.totalorder %s141, %s143
    %p147 = scmp.eq.s32.totalorder %s17, 0
    %p148 = por %p146, %p147
    %p149 = scmp.ne.s32.totalorder %s141, %s143
    %p150 = scmp.eq.s32.totalorder %s22, 7
    %p151 = por %p149, %p150
    %p152 = scmp.ne.s32.totalorder %s143, %s144
    %p153 = scmp.eq.s32.totalorder %s22, 0
    %p154 = por %p152, %p153
    %p155 = scmp.ne.s32.totalorder %s143, %s144
    %p156 = scmp.eq.s32.totalorder %s23, 7
    %p157 = por %p155, %p156
    %p159 = scmp.ne.s32.totalorder %s144, %s158
    %p160 = scmp.eq.s32.totalorder %s23, 0
    %p161 = por %p159, %p160
    %s163 = sadd.s32 %s162, 1
    %p166 = scmp.eq.s32.totalorder %s17, 7
    %p167 = scmp.ne.s32.totalorder %s162, %s164
    %p168 = scmp.eq.s32.totalorder %s17, 0
    %p169 = por %p167, %p168
    %p170 = scmp.ne.s32.totalorder %s162, %s164
    %p171 = scmp.eq.s32.totalorder %s22, 7
    %p172 = por %p170, %p171
    %p173 = scmp.ne.s32.totalorder %s164, %s165
    %p174 = scmp.eq.s32.totalorder %s22, 0
    %p175 = por %p173, %p174
    %p176 = scmp.ne.s32.totalorder %s164, %s165
    %p177 = scmp.eq.s32.totalorder %s23, 7
    %p178 = por %p176, %p177
    %p180 = scmp.ne.s32.totalorder %s165, %s179
    %p181 = scmp.eq.s32.totalorder %s23, 0
    %p182 = por %p180, %p181
    %s184 = sadd.s32 %s183, 1
    %p187 = scmp.eq.s32.totalorder %s17, 7
    %p188 = scmp.ne.s32.totalorder %s183, %s185
    %p189 = scmp.eq.s32.totalorder %s17, 0
    %p190 = por %p188, %p189
    %p191 = scmp.ne.s32.totalorder %s183, %s185
    %p192 = scmp.eq.s32.totalorder %s22, 7
    %p193 = por %p191, %p192
    %p194 = scmp.ne.s32.totalorder %s185, %s186
    %p195 = scmp.eq.s32.totalorder %s22, 0
    %p196 = por %p194, %p195
    %p197 = scmp.ne.s32.totalorder %s185, %s186
    %p198 = scmp.eq.s32.totalorder %s23, 7
    %p199 = por %p197, %p198
    %p201 = scmp.ne.s32.totalorder %s186, %s200
    %p202 = scmp.eq.s32.totalorder %s23, 0
    %p203 = por %p201, %p202
    %s205 = sadd.s32 %s204, 1
    %p208 = scmp.eq.s32.totalorder %s17, 7
    %p209 = scmp.ne.s32.totalorder %s204, %s206
    %p210 = scmp.eq.s32.totalorder %s17, 0
    %p211 = por %p209, %p210
    %p212 = scmp.ne.s32.totalorder %s204, %s206
    %p213 = scmp.eq.s32.totalorder %s22, 7
    %p214 = por %p212, %p213
    %p215 = scmp.ne.s32.totalorder %s206, %s207
    %p216 = scmp.eq.s32.totalorder %s22, 0
    %p217 = por %p215, %p216
    %p218 = scmp.ne.s32.totalorder %s206, %s207
    %p219 = scmp.eq.s32.totalorder %s23, 7
    %p220 = por %p218, %p219
    %p222 = scmp.ne.s32.totalorder %s207, %s221
    %p223 = scmp.eq.s32.totalorder %s23, 0
    %p224 = por %p222, %p223
    %s226 = sadd.s32 %s225, 1
    %p229 = scmp.eq.s32.totalorder %s17, 7
    %p230 = scmp.ne.s32.totalorder %s225, %s227
    %p231 = scmp.eq.s32.totalorder %s17, 0
    %p232 = por %p230, %p231
    %p233 = scmp.ne.s32.totalorder %s225, %s227
    %p234 = scmp.eq.s32.totalorder %s22, 7
    %p235 = por %p233, %p234
    %p236 = scmp.ne.s32.totalorder %s227, %s228
    %p237 = scmp.eq.s32.totalorder %s22, 0
    %p238 = por %p236, %p237
    %p239 = scmp.ne.s32.totalorder %s227, %s228
    %p240 = scmp.eq.s32.totalorder %s23, 7
    %p241 = por %p239, %p240
    %p243 = scmp.ne.s32.totalorder %s228, %s242
    %p244 = scmp.eq.s32.totalorder %s23, 0
    %p245 = por %p243, %p244
    %s246 = ssub.s32 %s24, %s36
    %p247 = scmp.eq.s32.totalorder %s246, 0
    %s249 = sadd.s32 %s248, 1
    %s250 = scalar_select %p247, %s248, %s249
    %p253 = pneg %p247
    %p254 = scmp.eq.s32.totalorder %s17, 7
    %p255 = por %p253, %p254
    %p256 = scmp.ne.s32.totalorder %s248, %s251
    %p257 = scmp.eq.s32.totalorder %s17, 0
    %p258 = por %p256, %p257
    %p259 = scmp.ne.s32.totalorder %s248, %s251
    %p260 = scmp.eq.s32.totalorder %s22, 7
    %p261 = por %p259, %p260
    %p262 = scmp.ne.s32.totalorder %s251, %s252
    %p263 = scmp.eq.s32.totalorder %s22, 0
    %p264 = por %p262, %p263
    %p265 = scmp.ne.s32.totalorder %s251, %s252
    %p266 = scmp.eq.s32.totalorder %s23, 7
    %p267 = por %p265, %p266
    %p269 = scmp.ne.s32.totalorder %s252, %s268
    %p270 = scmp.eq.s32.totalorder %s23, 0
    %p271 = por %p269, %p270
    %s272 = ssub.s32 %s24, %s36
    %p273 = scmp.eq.s32.totalorder %s272, 0
    %s275 = sadd.s32 %s274, 1
    %s276 = scalar_select %p273, %s274, %s275
    %p279 = pneg %p273
    %p280 = scmp.eq.s32.totalorder %s17, 7
    %p281 = por %p279, %p280
    %p282 = scmp.ne.s32.totalorder %s274, %s277
    %p283 = scmp.eq.s32.totalorder %s17, 0
    %p284 = por %p282, %p283
    %p285 = scmp.ne.s32.totalorder %s274, %s277
    %p286 = scmp.eq.s32.totalorder %s22, 7
    %p287 = por %p285, %p286
    %p288 = scmp.ne.s32.totalorder %s277, %s278
    %p289 = scmp.eq.s32.totalorder %s22, 0
    %p290 = por %p288, %p289
    %p291 = scmp.ne.s32.totalorder %s277, %s278
    %p292 = scmp.eq.s32.totalorder %s23, 7
    %p293 = por %p291, %p292
    %p295 = scmp.ne.s32.totalorder %s278, %s294
    %p296 = scmp.eq.s32.totalorder %s23, 0
    %p297 = por %p295, %p296
    %p298 = scmp.le.s32.totalorder 1, %s17
    %p299 = scmp.lt.s32.totalorder %s17, 9
    %p300 = pnand %p298, %p299
    %p301 = pneg %p300
    // Predicated region
    $region9: #{transformer_moe_layer.2} parent=5 // pred_check
      _
    $region10: #{transformer_moe_layer.2} parent=5 // pred_check_branch
      %303 = sbr.rel (%p300) target = $region12
    $region11: #{transformer_moe_layer.2} parent=5 // pred_region
      %s304 = ssub.s32 %s17, 1
      // Predicated region
      $region13: #{transformer_moe_layer.2} parent=11 // pred_check
        %p305 = pneg %p154
      $region14: #{transformer_moe_layer.2} parent=11 // pred_check_branch
        %307 = sbr.rel (%p305) target = $region16
      $region15: #{transformer_moe_layer.2} parent=11 // pred_region
        _
      $region16: #{transformer_moe_layer.2} parent=11 // pred_fallthru
        _
      // Predicated region
      $region17: #{transformer_moe_layer.2} parent=11 // pred_check
        %p308 = pneg %p175
      $region18: #{transformer_moe_layer.2} parent=11 // pred_check_branch
        %310 = sbr.rel (%p308) target = $region20
      $region19: #{transformer_moe_layer.2} parent=11 // pred_region
        _
      $region20: #{transformer_moe_layer.2} parent=11 // pred_fallthru
        _
      // Predicated region
      $region21: #{transformer_moe_layer.2} parent=11 // pred_check
        %p311 = pneg %p196
      $region22: #{transformer_moe_layer.2} parent=11 // pred_check_branch
        %313 = sbr.rel (%p311) target = $region24
      $region23: #{transformer_moe_layer.2} parent=11 // pred_region
        _
      $region24: #{transformer_moe_layer.2} parent=11 // pred_fallthru
        _
      // Predicated region
      $region25: #{transformer_moe_layer.2} parent=11 // pred_check
        %p314 = pneg %p217
      $region26: #{transformer_moe_layer.2} parent=11 // pred_check_branch
        %316 = sbr.rel (%p314) target = $region28
      $region27: #{transformer_moe_layer.2} parent=11 // pred_region
        _
      $region28: #{transformer_moe_layer.2} parent=11 // pred_fallthru
        _
      // Predicated region
      $region29: #{transformer_moe_layer.2} parent=11 // pred_check
        %p317 = pneg %p238
      $region30: #{transformer_moe_layer.2} parent=11 // pred_check_branch
        %319 = sbr.rel (%p317) target = $region32
      $region31: #{transformer_moe_layer.2} parent=11 // pred_region
        _
      $region32: #{transformer_moe_layer.2} parent=11 // pred_fallthru
        _
    $region12: #{transformer_moe_layer.2} parent=5 // pred_fallthru
      _
    %p320 = scmp.lt.s32.totalorder %s17, 8
    // Predicated region
    $region33: #{transformer_moe_layer.2} parent=5 // pred_check
      %p321 = pneg %p320
    $region34: #{transformer_moe_layer.2} parent=5 // pred_check_branch
      %323 = sbr.rel (%p321) target = $region36
    $region35: #{transformer_moe_layer.2} parent=5 // pred_region
      // Predicated region
      $region37: #{transformer_moe_layer.2} parent=35 // pred_check
        %p324 = pneg %p49
      $region38: #{transformer_moe_layer.2} parent=35 // pred_check_branch
        %326 = sbr.rel (%p324) target = $region40
      $region39: #{transformer_moe_layer.2} parent=35 // pred_region
        %p327 = scmp.lt.s32.totalorder %s24, 1
        %s328 = scalar_select %p327, %s24, 1
        %s329 = smul.addr %s328, 8
        %s330 = scalar_lea.vmem %s0, %s329
      $region40: #{transformer_moe_layer.2} parent=35 // pred_fallthru
        _
      // Predicated region
      $region41: #{transformer_moe_layer.2} parent=35 // pred_check
        %p331 = pneg %p75
      $region42: #{transformer_moe_layer.2} parent=35 // pred_check_branch
        %333 = sbr.rel (%p331) target = $region44
      $region43: #{transformer_moe_layer.2} parent=35 // pred_region
        %p334 = scmp.lt.s32.totalorder %s25, 3
        %s335 = scalar_select %p334, %s25, 3
        %s336 = smul.addr %s335, 4
        %s337 = smul.addr %s336, 4
        %s338 = scalar_lea.vmem %s1, %s337
      $region44: #{transformer_moe_layer.2} parent=35 // pred_fallthru
        _
      // Predicated region
      $region45: #{transformer_moe_layer.2} parent=35 // pred_check
        %p339 = pneg %p101
      $region46: #{transformer_moe_layer.2} parent=35 // pred_check_branch
        %341 = sbr.rel (%p339) target = $region48
      $region47: #{transformer_moe_layer.2} parent=35 // pred_region
        %p342 = scmp.lt.s32.totalorder %s25, 3
        %s343 = scalar_select %p342, %s25, 3
        %s344 = scalar_lea.vmem %s2, %s343
      $region48: #{transformer_moe_layer.2} parent=35 // pred_fallthru
        _
      // Predicated region
      $region49: #{transformer_moe_layer.2} parent=35 // pred_check
        %p345 = pneg %p127
      $region50: #{transformer_moe_layer.2} parent=35 // pred_check_branch
        %347 = sbr.rel (%p345) target = $region52
      $region51: #{transformer_moe_layer.2} parent=35 // pred_region
        %p348 = scmp.lt.s32.totalorder %s25, 3
        %s349 = scalar_select %p348, %s25, 3
        %s350 = smul.addr %s349, 4
        %s351 = scalar_lea.vmem %s3, %s350
      $region52: #{transformer_moe_layer.2} parent=35 // pred_fallthru
        _
    $region36: #{transformer_moe_layer.2} parent=5 // pred_fallthru
      _
    %p352 = scmp.le.s32.totalorder 1, %s17
    %p353 = scmp.lt.s32.totalorder %s17, 9
    %p354 = pnand %p352, %p353
    %p355 = pneg %p354
    // Predicated region
    $region53: #{transformer_moe_layer.2} parent=5 // pred_check
      _
    $region54: #{transformer_moe_layer.2} parent=5 // pred_check_branch
      %357 = sbr.rel (%p354) target = $region56
    $region55: #{transformer_moe_layer.2} parent=5 // pred_region
      %s358 = ssub.s32 %s17, 1
      %p359 = scmp.lt.s32.totalorder %s26, 1
      %s360 = scalar_select %p359, %s26, 1
      %s361 = smul.addr %s360, 8
      %s362 = scalar_lea.vmem %s0, %s361
      %p363 = pneg %p55
      %p364 = pneg %p52
      %p365 = scmp.lt.s32.totalorder %s27, 3
      %s366 = scalar_select %p365, %s27, 3
      %s367 = smul.addr %s366, 4
      %s368 = smul.addr %s367, 4
      %s369 = scalar_lea.vmem %s1, %s368
      %p370 = pneg %p81
      %p371 = pneg %p78
      %p372 = scmp.lt.s32.totalorder %s27, 3
      %s373 = scalar_select %p372, %s27, 3
      %s374 = scalar_lea.vmem %s2, %s373
      %p375 = pneg %p107
      %p376 = pneg %p104
      %p377 = scmp.lt.s32.totalorder %s27, 3
      %s378 = scalar_select %p377, %s27, 3
      %s379 = smul.addr %s378, 4
      %s380 = scalar_lea.vmem %s3, %s379
      %p381 = pneg %p133
      %p382 = pneg %p130
      %p383 = pneg %p154
      %p384 = pneg %p151
      %p385 = pneg %p175
      %p386 = pneg %p172
      %p387 = pneg %p196
      %p388 = pneg %p193
      %p389 = pneg %p217
      %p390 = pneg %p214
      %p391 = pneg %p238
      %p392 = pneg %p235
      %p393 = pneg %p264
      %p394 = pneg %p261
      %p395 = scmp.lt.s32.totalorder %s26, 1
      %s396 = scalar_select %p395, %s26, 1
      %s397 = smul.addr %s396, 8
      %s398 = scalar_lea.vmem %s9, %s397
      %p399 = pneg %p290
      %p400 = pneg %p287
      %p401 = scmp.lt.s32.totalorder %s26, 1
      %s402 = scalar_select %p401, %s26, 1
      %s403 = smul.addr %s402, 8
      %s404 = scalar_lea.vmem %s10, %s403
      %p405 = scmp.lt.s32.totalorder %s26, 1
      %s406 = scalar_select %p405, %s26, 1
      %s407 = smul.addr %s406, 8
      %s408 = scalar_lea.vmem %s0, %s407
      %p409 = scmp.lt.s32.totalorder %s27, 3
      %s410 = scalar_select %p409, %s27, 3
      %s411 = smul.addr %s410, 4
      %s412 = smul.addr %s411, 4
      %s413 = scalar_lea.vmem %s1, %s412
      %p414 = scmp.lt.s32.totalorder %s27, 3
      %s415 = scalar_select %p414, %s27, 3
      %s416 = scalar_lea.vmem %s2, %s415
      %p417 = scmp.lt.s32.totalorder %s27, 3
      %s418 = scalar_select %p417, %s27, 3
      %s419 = smul.addr %s418, 4
      %s420 = scalar_lea.vmem %s3, %s419
      %p421 = scmp.lt.s32.totalorder %s26, 1
      %s422 = scalar_select %p421, %s26, 1
      %s423 = smul.addr %s422, 8
      %s424 = scalar_lea.vmem %s9, %s423
      %p425 = scmp.lt.s32.totalorder %s26, 1
      %s426 = scalar_select %p425, %s26, 1
      %s427 = smul.addr %s426, 8
      %s428 = scalar_lea.vmem %s10, %s427
      %v430 = vld [vmem:[%s408] sm:$0xff]
      %v431 = vpack.c.bf16 %v430, %v430
      %p432 = scmp.eq.s32.totalorder %s27, 0
      // Predicated region
      $region57: #{transformer_moe_layer.2} parent=55 // pred_check
        %p433 = pneg %p432
      $region58: #{transformer_moe_layer.2} parent=55 // pred_check_branch
        %435 = sbr.rel (%p433) target = $region60
      $region59: #{transformer_moe_layer.2} parent=55 // pred_region
        %v436 = vld [vmem:[%s4] sm:$0x1]
        %v438 = vlaneseq
        %v439 = vshrl.u32 %v438, 7
        %v440 = vsub.s32 0, %v439
        %v441 = vrot.slane %v436, %v440
        %v443 = vadd.f32 %v430, %v441
        %vm444 = vcmask 261120
        %445 = vst.msk [vmem:[#allocation2] sm:$0xff] %vm444, %v443
      $region60: #{transformer_moe_layer.2} parent=55 // pred_fallthru
        _
      %v446 = vld [vmem:[%s413] sm:$0xf]
      %v447 = vld [vmem:[%s413 + $0x4] sm:$0xf]
      %v448 = vld [vmem:[%s413 + $0x8] sm:$0xf]
      %v449 = vld [vmem:[%s413 + $0xc] sm:$0xf]
      %v450 = vld [vmem:[%s416] sm:$0x1]
      %v452 = vlaneseq
      %v453 = vshrl.u32 %v452, 7
      %v454 = vsub.s32 0, %v453
      %v455 = vrot.slane %v450, %v454
      %v461 = vunpack.c.l.b16 %v446
      %v462 = vunpack.c.l.b16 %v447
      %v463 = vunpack.c.l.b16 %v448
      %v464 = vunpack.c.l.b16 %v449
      %v465 = vpack.c.b16 %v462, %v461
      %v466 = vpack.c.b16 %v464, %v463
      %vm469 = vcmask 261120
      %v471 = vsel %vm469, %v431, 0
      %473 = vmatprep.subr.bf16.mxu0 0
      %474 = vmatpush1.bf16.msra.mxu0 %v465
      %475 = vmatprep.subr.bf16.mxu0 0
      %476 = vmatpush1.bf16.msra.mxu0 %v466
      %477 = vmatprep.subr.bf16.mxu0 0
      %478 = vmatpush1.bf16.msra.mxu0 0
      %479 = vmatprep.subr.bf16.mxu0 0
      %480 = vmatpush1.bf16.msra.mxu0 0
      %481 = vmatprep.subr.bf16.mxu0 0
      %482 = vmatpush1.bf16.msra.mxu0 0
      %483 = vmatprep.subr.bf16.mxu0 0
      %484 = vmatpush1.bf16.msra.mxu0 0
      %485 = vmatprep.subr.bf16.mxu0 0
      %486 = vmatpush1.bf16.msra.mxu0 0
      %487 = vmatprep.subr.bf16.mxu0 0
      %488 = vmatpush1.bf16.msra.mxu0 0
      %489 = vmatprep.subr.bf16.mxu0 0
      %490 = vmatpush1.bf16.msra.mxu0 0
      %491 = vmatprep.subr.bf16.mxu0 0
      %492 = vmatpush1.bf16.msra.mxu0 0
      %493 = vmatprep.subr.bf16.mxu0 0
      %494 = vmatpush1.bf16.msra.mxu0 0
      %495 = vmatprep.subr.bf16.mxu0 0
      %496 = vmatpush1.bf16.msra.mxu0 0
      %497 = vmatprep.subr.bf16.mxu0 0
      %498 = vmatpush1.bf16.msra.mxu0 0
      %499 = vmatprep.subr.bf16.mxu0 0
      %500 = vmatpush1.bf16.msra.mxu0 0
      %501 = vmatprep.subr.bf16.mxu0 0
      %502 = vmatpush1.bf16.msra.mxu0 0
      %503 = vmatprep.subr.bf16.mxu0 0
      %504 = vmatpush1.bf16.msra.mxu0 0
      %505 = vmatprep.mubr.bf16.mxu0 0
      %506 = vmatmul.mubr.bf16.gmra.mrb[0].mxu0 %v471
      %v507 = vpop.f32.mrb[0].mxu0
      %v508 = vadd.f32 %v455, %v507
      %v509 = vpop.f32.mrb[0].mxu0
      %v510 = vpop.f32.mrb[0].mxu0
      %v511 = vpop.f32.mrb[0].mxu0
      %512 = vdwg.mxu0
      %v513 = vmul.f32 %v508, 0.35355338
      %v514 = vpack.c.bf16 %v513, %v513
      %v515 = vpack.c.bf16 %v508, %v508
      %517 = vrot.lane.b32.xlu0 %v515, 120
      %v518 = vpop.permute.xlu0 %517
      %vm519 = vcmask 64512
      %v521 = vsel %vm519, %v514, 0
      %v524 = vsel %vm519, %v518, 0
      %526 = vmatprep.subr.bf16.mxu0 0
      %527 = vmatpush1.bf16.xpose.msra.mxu0 %v524
      %528 = vmatprep.subr.bf16.mxu0 0
      %529 = vmatpush1.bf16.xpose.msra.mxu0 0
      %530 = vmatprep.subr.bf16.mxu0 0
      %531 = vmatpush1.bf16.xpose.msra.mxu0 0
      %532 = vmatprep.subr.bf16.mxu0 0
      %533 = vmatpush1.bf16.xpose.msra.mxu0 0
      %534 = vmatprep.subr.bf16.mxu0 0
      %535 = vmatpush1.bf16.xpose.msra.mxu0 0
      %536 = vmatprep.subr.bf16.mxu0 0
      %537 = vmatpush1.bf16.xpose.msra.mxu0 0
      %538 = vmatprep.subr.bf16.mxu0 0
      %539 = vmatpush1.bf16.xpose.msra.mxu0 0
      %540 = vmatprep.subr.bf16.mxu0 0
      %541 = vmatpush1.bf16.xpose.msra.mxu0 0
      %542 = vmatprep.subr.bf16.mxu0 0
      %543 = vmatpush1.bf16.xpose.msra.mxu0 0
      %544 = vmatprep.subr.bf16.mxu0 0
      %545 = vmatpush1.bf16.xpose.msra.mxu0 0
      %546 = vmatprep.subr.bf16.mxu0 0
      %547 = vmatpush1.bf16.xpose.msra.mxu0 0
      %548 = vmatprep.subr.bf16.mxu0 0
      %549 = vmatpush1.bf16.xpose.msra.mxu0 0
      %550 = vmatprep.subr.bf16.mxu0 0
      %551 = vmatpush1.bf16.xpose.msra.mxu0 0
      %552 = vmatprep.subr.bf16.mxu0 0
      %553 = vmatpush1.bf16.xpose.msra.mxu0 0
      %554 = vmatprep.subr.bf16.mxu0 0
      %555 = vmatpush1.bf16.xpose.msra.mxu0 0
      %556 = vmatprep.subr.bf16.mxu0 0
      %557 = vmatpush1.bf16.xpose.msra.mxu0 0
      %558 = vmatprep.mubr.bf16.mxu0 0
      %559 = vmatmul.mubr.bf16.gmra.mrb[0].mxu0 %v521
      %v560 = vpop.f32.mrb[0].mxu0
      %v561 = vadd.f32 0.0, %v560
      %v562 = vpop.f32.mrb[0].mxu0
      %v563 = vpop.f32.mrb[0].mxu0
      %v564 = vpop.f32.mrb[0].mxu0
      %565 = vdwg.mxu0
      %v566 = vsel %vm519, %v561, -inf
      %567 = vmax.xlane.f32.xlu0 %v566
      %v568 = vpop.xlane.xlu0 %567
      %v569 = vsub.f32 %v561, %v568
      %v570 = vmul.f32 %v569, 1.442695
      %v571 = vpow.pop %v570
      %v572 = vsel %vm519, %v571, 0.0
      %573 = vadd.xlane.f32.xlu0 %v572
      %v574 = vpop.xlane.xlu0 %573
      %v575 = vrcp.pop %v574
      %v576 = vmul.f32 %v571, %v575
      %v577 = vpack.c.bf16 %v576, %v576
      %578 = vrot.lane.b32.xlu0 %v515, 112
      %v579 = vpop.permute.xlu0 %578
      %v581 = vsel %vm519, %v577, 0
      %vm583 = vcmask 1043456
      %v585 = vsel %vm583, %v579, 0
      %587 = vmatprep.subr.bf16.mxu0 0
      %588 = vmatpush1.bf16.msra.mxu0 %v585
      %589 = vmatprep.subr.bf16.mxu0 0
      %590 = vmatpush1.bf16.msra.mxu0 0
      %591 = vmatprep.subr.bf16.mxu0 0
      %592 = vmatpush1.bf16.msra.mxu0 0
      %593 = vmatprep.subr.bf16.mxu0 0
      %594 = vmatpush1.bf16.msra.mxu0 0
      %595 = vmatprep.subr.bf16.mxu0 0
      %596 = vmatpush1.bf16.msra.mxu0 0
      %597 = vmatprep.subr.bf16.mxu0 0
      %598 = vmatpush1.bf16.msra.mxu0 0
      %599 = vmatprep.subr.bf16.mxu0 0
      %600 = vmatpush1.bf16.msra.mxu0 0
      %601 = vmatprep.subr.bf16.mxu0 0
      %602 = vmatpush1.bf16.msra.mxu0 0
      %603 = vmatprep.subr.bf16.mxu0 0
      %604 = vmatpush1.bf16.msra.mxu0 0
      %605 = vmatprep.subr.bf16.mxu0 0
      %606 = vmatpush1.bf16.msra.mxu0 0
      %607 = vmatprep.subr.bf16.mxu0 0
      %608 = vmatpush1.bf16.msra.mxu0 0
      %609 = vmatprep.subr.bf16.mxu0 0
      %610 = vmatpush1.bf16.msra.mxu0 0
      %611 = vmatprep.subr.bf16.mxu0 0
      %612 = vmatpush1.bf16.msra.mxu0 0
      %613 = vmatprep.subr.bf16.mxu0 0
      %614 = vmatpush1.bf16.msra.mxu0 0
      %615 = vmatprep.subr.bf16.mxu0 0
      %616 = vmatpush1.bf16.msra.mxu0 0
      %617 = vmatprep.subr.bf16.mxu0 0
      %618 = vmatpush1.bf16.msra.mxu0 0
      %619 = vmatprep.mubr.bf16.mxu0 0
      %620 = vmatmul.mubr.bf16.gmra.mrb[0].mxu0 %v581
      %v621 = vpop.f32.mrb[0].mxu0
      %v622 = vadd.f32 0.0, %v621
      %v623 = vpop.f32.mrb[0].mxu0
      %v624 = vpop.f32.mrb[0].mxu0
      %v625 = vpop.f32.mrb[0].mxu0
      %626 = vdwg.mxu0
      %v627 = vld [vmem:[#allocation2] sm:$0xff]
      %v628 = vpack.c.bf16 %v622, %v622
      %v629 = vld [vmem:[%s420] sm:$0xf]
      %v631 = vsel %vm519, %v628, 0
      %v634 = vsel %vm583, %v629, 0
      %636 = vmatprep.subr.bf16.mxu0 0
      %637 = vmatpush1.bf16.msra.mxu0 %v634
      %638 = vmatprep.subr.bf16.mxu0 0
      %639 = vmatpush1.bf16.msra.mxu0 0
      %640 = vmatprep.subr.bf16.mxu0 0
      %641 = vmatpush1.bf16.msra.mxu0 0
      %642 = vmatprep.subr.bf16.mxu0 0
      %643 = vmatpush1.bf16.msra.mxu0 0
      %644 = vmatprep.subr.bf16.mxu0 0
      %645 = vmatpush1.bf16.msra.mxu0 0
      %646 = vmatprep.subr.bf16.mxu0 0
      %647 = vmatpush1.bf16.msra.mxu0 0
      %648 = vmatprep.subr.bf16.mxu0 0
      %649 = vmatpush1.bf16.msra.mxu0 0
      %650 = vmatprep.subr.bf16.mxu0 0
      %651 = vmatpush1.bf16.msra.mxu0 0
      %652 = vmatprep.subr.bf16.mxu0 0
      %653 = vmatpush1.bf16.msra.mxu0 0
      %654 = vmatprep.subr.bf16.mxu0 0
      %655 = vmatpush1.bf16.msra.mxu0 0
      %656 = vmatprep.subr.bf16.mxu0 0
      %657 = vmatpush1.bf16.msra.mxu0 0
      %658 = vmatprep.subr.bf16.mxu0 0
      %659 = vmatpush1.bf16.msra.mxu0 0
      %660 = vmatprep.subr.bf16.mxu0 0
      %661 = vmatpush1.bf16.msra.mxu0 0
      %662 = vmatprep.subr.bf16.mxu0 0
      %663 = vmatpush1.bf16.msra.mxu0 0
      %664 = vmatprep.subr.bf16.mxu0 0
      %665 = vmatpush1.bf16.msra.mxu0 0
      %666 = vmatprep.subr.bf16.mxu0 0
      %667 = vmatpush1.bf16.msra.mxu0 0
      %668 = vmatprep.mubr.bf16.mxu0 0
      %669 = vmatmul.mubr.bf16.gmra.mrb[0].mxu0 %v631
      %v670 = vpop.f32.mrb[0].mxu0
      %v671 = vadd.f32 0.0, %v670
      %v672 = vpop.f32.mrb[0].mxu0
      %v673 = vpop.f32.mrb[0].mxu0
      %v674 = vpop.f32.mrb[0].mxu0
      %675 = vdwg.mxu0
      %v676 = vadd.f32 %v627, %v671
      %677 = vst.msk [vmem:[#allocation2] sm:$0xff] %vm469, %v676
      %p678 = scmp.eq.s32.totalorder %s27, 3
      // Predicated region
      $region61: #{transformer_moe_layer.2} parent=55 // pred_check
        %p679 = pneg %p678
      $region62: #{transformer_moe_layer.2} parent=55 // pred_check_branch
        %681 = sbr.rel (%p679) target = $region64
      $region63: #{transformer_moe_layer.2} parent=55 // pred_region
        %v682 = vld [vmem:[#allocation2] sm:$0xff]
        %v683 = vsel %vm469, %v682, 0.0
        %684 = vadd.xlane.f32.xlu0 %v683
        %v685 = vpop.xlane.xlu0 %684
        %v686 = vrcp.pop 32.0
        %v687 = vmul.f32 %v685, %v686
        %v688 = vsub.f32 %v682, %v687
        %v689 = vmul.f32 %v688, %v688
        %v690 = vsel %vm469, %v689, 0.0
        %691 = vadd.xlane.f32.xlu0 %v690
        %v692 = vpop.xlane.xlu0 %691
        %v693 = vmul.f32 %v692, %v686
        %v694 = vadd.f32 %v693, 1e-05
        %v695 = vrsqrt.pop %v694
        %v696 = vmul.f32 %v688, %v695
        %v697 = vld [vmem:[%s5] sm:$0x1]
        %v699 = vlaneseq
        %v700 = vshrl.u32 %v699, 7
        %v701 = vsub.s32 0, %v700
        %v702 = vrot.slane %v697, %v701
        %v704 = vmul.f32 %v696, %v702
        %v705 = vld [vmem:[%s6] sm:$0x1]
        %v707 = vlaneseq
        %v708 = vshrl.u32 %v707, 7
        %v709 = vsub.s32 0, %v708
        %v710 = vrot.slane %v705, %v709
        %v712 = vadd.f32 %v704, %v710
        %713 = vst.msk [vmem:[%s424] sm:$0xff] %vm469, %v712
        %v714 = vpack.c.bf16 %v712, %v712
        %v715 = vld [vmem:[%s7] sm:$0xf]
        %v716 = vld [vmem:[%s7 + $0x4] sm:$0xf]
        %v717 = vld [vmem:[%s7 + $0x8] sm:$0xf]
        %v718 = vld [vmem:[%s7 + $0xc] sm:$0xf]
        %v719 = vld [vmem:[%s8] sm:$0x1]
        %v721 = vlaneseq
        %v722 = vshrl.u32 %v721, 7
        %v723 = vsub.s32 0, %v722
        %v724 = vrot.slane %v719, %v723
        %v730 = vunpack.c.l.b16 %v715
        %v731 = vunpack.c.l.b16 %v716
        %v732 = vunpack.c.l.b16 %v717
        %v733 = vunpack.c.l.b16 %v718
        %v734 = vpack.c.b16 %v731, %v730
        %v735 = vpack.c.b16 %v733, %v732
        %v739 = vsel %vm469, %v714, 0
        %741 = vmatprep.subr.bf16.mxu0 0
        %742 = vmatpush1.bf16.msra.mxu0 %v734
        %743 = vmatprep.subr.bf16.mxu0 0
        %744 = vmatpush1.bf16.msra.mxu0 %v735
        %745 = vmatprep.subr.bf16.mxu0 0
        %746 = vmatpush1.bf16.msra.mxu0 0
        %747 = vmatprep.subr.bf16.mxu0 0
        %748 = vmatpush1.bf16.msra.mxu0 0
        %749 = vmatprep.subr.bf16.mxu0 0
        %750 = vmatpush1.bf16.msra.mxu0 0
        %751 = vmatprep.subr.bf16.mxu0 0
        %752 = vmatpush1.bf16.msra.mxu0 0
        %753 = vmatprep.subr.bf16.mxu0 0
        %754 = vmatpush1.bf16.msra.mxu0 0
        %755 = vmatprep.subr.bf16.mxu0 0
        %756 = vmatpush1.bf16.msra.mxu0 0
        %757 = vmatprep.subr.bf16.mxu0 0
        %758 = vmatpush1.bf16.msra.mxu0 0
        %759 = vmatprep.subr.bf16.mxu0 0
        %760 = vmatpush1.bf16.msra.mxu0 0
        %761 = vmatprep.subr.bf16.mxu0 0
        %762 = vmatpush1.bf16.msra.mxu0 0
        %763 = vmatprep.subr.bf16.mxu0 0
        %764 = vmatpush1.bf16.msra.mxu0 0
        %765 = vmatprep.subr.bf16.mxu0 0
        %766 = vmatpush1.bf16.msra.mxu0 0
        %767 = vmatprep.subr.bf16.mxu0 0
        %768 = vmatpush1.bf16.msra.mxu0 0
        %769 = vmatprep.subr.bf16.mxu0 0
        %770 = vmatpush1.bf16.msra.mxu0 0
        %771 = vmatprep.subr.bf16.mxu0 0
        %772 = vmatpush1.bf16.msra.mxu0 0
        %773 = vmatprep.mubr.bf16.mxu0 0
        %774 = vmatmul.mubr.bf16.gmra.mrb[0].mxu0 %v739
        %v775 = vpop.f32.mrb[0].mxu0
        %v776 = vadd.f32 %v724, %v775
        %v777 = vpop.f32.mrb[0].mxu0
        %v778 = vpop.f32.mrb[0].mxu0
        %v779 = vpop.f32.mrb[0].mxu0
        %780 = vdwg.mxu0
        %vm781 = vcmask 31744
        %v782 = vsel %vm781, %v776, -inf
        %783 = vmax.xlane.f32.xlu0 %v782
        %v784 = vpop.xlane.xlu0 %783
        %v785 = vsub.f32 %v776, %v784
        %v786 = vmul.f32 %v785, 1.442695
        %v787 = vpow.pop %v786
        %v788 = vsel %vm781, %v787, 0.0
        %789 = vadd.xlane.f32.xlu0 %v788
        %v790 = vpop.xlane.xlu0 %789
        %v791 = vrcp.pop %v790
        %v792 = vmul.f32 %v787, %v791
        %793 = vst.msk [vmem:[%s428] sm:$0xff] %vm781, %v792
      $region64: #{transformer_moe_layer.2} parent=55 // pred_fallthru
        _
      %p794 = scmp.lt.s32.totalorder %s26, 1
      %s795 = scalar_select %p794, %s26, 1
      %s796 = smul.addr %s795, 8
      %s797 = scalar_lea.vmem %s9, %s796
      %p798 = scmp.lt.s32.totalorder %s26, 1
      %s799 = scalar_select %p798, %s26, 1
      %s800 = smul.addr %s799, 8
      %s801 = scalar_lea.vmem %s10, %s800
      // Predicated region
      $region65: #{transformer_moe_layer.2} parent=55 // pred_check
        %p802 = pneg %p261
      $region66: #{transformer_moe_layer.2} parent=55 // pred_check_branch
        %804 = sbr.rel (%p802) target = $region68
      $region67: #{transformer_moe_layer.2} parent=55 // pred_region
        _
      $region68: #{transformer_moe_layer.2} parent=55 // pred_fallthru
        _
      // Predicated region
      $region69: #{transformer_moe_layer.2} parent=55 // pred_check
        %p805 = pneg %p287
      $region70: #{transformer_moe_layer.2} parent=55 // pred_check_branch
        %807 = sbr.rel (%p805) target = $region72
      $region71: #{transformer_moe_layer.2} parent=55 // pred_region
        _
      $region72: #{transformer_moe_layer.2} parent=55 // pred_fallthru
        _
    $region56: #{transformer_moe_layer.2} parent=5 // pred_fallthru
      _
    %p808 = scmp.le.s32.totalorder 2, %s17
    // Predicated region
    $region73: #{transformer_moe_layer.2} parent=5 // pred_check
      %p809 = pneg %p808
    $region74: #{transformer_moe_layer.2} parent=5 // pred_check_branch
      %811 = sbr.rel (%p809) target = $region76
    $region75: #{transformer_moe_layer.2} parent=5 // pred_region
      %s812 = ssub.s32 %s17, 2
      // Predicated region
      $region77: #{transformer_moe_layer.2} parent=75 // pred_check
        %p813 = pneg %p267
      $region78: #{transformer_moe_layer.2} parent=75 // pred_check_branch
        %815 = sbr.rel (%p813) target = $region80
      $region79: #{transformer_moe_layer.2} parent=75 // pred_region
        %p816 = scmp.lt.s32.totalorder %s28, 1
        %s817 = scalar_select %p816, %s28, 1
        %s818 = smul.addr %s817, 8
        %s819 = scalar_lea.vmem %s9, %s818
      $region80: #{transformer_moe_layer.2} parent=75 // pred_fallthru
        _
      // Predicated region
      $region81: #{transformer_moe_layer.2} parent=75 // pred_check
        %p820 = pneg %p293
      $region82: #{transformer_moe_layer.2} parent=75 // pred_check_branch
        %822 = sbr.rel (%p820) target = $region84
      $region83: #{transformer_moe_layer.2} parent=75 // pred_region
        %p823 = scmp.lt.s32.totalorder %s28, 1
        %s824 = scalar_select %p823, %s28, 1
        %s825 = smul.addr %s824, 8
        %s826 = scalar_lea.vmem %s10, %s825
      $region84: #{transformer_moe_layer.2} parent=75 // pred_fallthru
        _
    $region76: #{transformer_moe_layer.2} parent=5 // pred_fallthru
      _
  $region6: #{transformer_moe_layer.2} parent=0 // loop_footer
    %s21 = sadd.s32 1, %s17
  $region7: #{transformer_moe_layer.2} parent=0 // loop_footer_branch
    %16 = sbr.rel target = $region3
  $region8: #{transformer_moe_layer.2} parent=0 // loop_exit
    _

</llo_original>
